<compile_context>
chip_gen: v7x
topology: tpu7x:2x2x1
jax: 0.10.0
libtpu: 0.0.40
codegen_flags: <defaults>
</compile_context>

<pallas_src>
import functools
import math

import jax
import jax.numpy as jnp
from jax.experimental import pallas as pl
from jax.experimental.pallas import tpu as pltpu


# ---------------------------------------------------------------------------
# Fused Pallas kernel: one batch element per grid step.
# ---------------------------------------------------------------------------
def _fused_self_attention_kernel(
    x_ref,        # (1, L, E)  input block
    w_in_ref,     # (E, 3E)    in_proj weight, pre-transposed, q-cols pre-scaled
    b_in_ref,     # (1, 3E)    in_proj bias (q part pre-scaled), f32
    w_out_ref,    # (E, E)     out_proj weight, pre-transposed
    b_out_ref,    # (1, E)     out_proj bias, f32
    mask_ref,     # (L, L)     additive float attention mask, f32
    o_ref,        # (1, L, E)  output block
    qkv_ref,      # VMEM scratch (L, 3E), mxu dtype
    attn_ref,     # VMEM scratch (L, E),  mxu dtype
    *,
    num_heads,
):
    L = x_ref.shape[1]
    E = x_ref.shape[2]
    D = E // num_heads

    # ---- in-projection: ONE full-K(=E) MXU matmul, f32 accumulation --------
    qkv_ref[...] = (
        jnp.dot(
            x_ref[0].astype(w_in_ref.dtype),
            w_in_ref[...],
            preferred_element_type=jnp.float32,
        )
        + b_in_ref[...]
    ).astype(qkv_ref.dtype)

    # ---- per-head scaled-dot-product attention ------------------------------
    # Each head reads static slices of the VMEM-resident qkv scratch and
    # commits its result into attn_ref -> nothing is carried across head
    # iterations, so vreg pressure is bounded to one head's (L,L) scores.
    for h in range(num_heads):
        qh = qkv_ref[:, h * D:(h + 1) * D]                    # (L, D) view->load
        kh = qkv_ref[:, E + h * D:E + (h + 1) * D]            # (L, D)
        vh = qkv_ref[:, 2 * E + h * D:2 * E + (h + 1) * D]    # (L, D)

        # scores = q @ k^T (contract last dims of both -> no explicit .T).
        # q already carries the 1/sqrt(D) factor (folded into w_in/b_in).
        s = jax.lax.dot_general(
            qh, kh, (((1,), (1,)), ((), ())),
            preferred_element_type=jnp.float32,
        ) + mask_ref[...]                                      # (L, L) f32

        # numerically-stable softmax over keys, all elementwise math in f32
        m = jnp.max(s, axis=-1, keepdims=True)
        p = jnp.exp(s - m)
        inv = pl.reciprocal(jnp.sum(p, axis=-1, keepdims=True), approx=True)

        oh = jnp.dot(
            p.astype(vh.dtype), vh, preferred_element_type=jnp.float32
        ) * inv                                                # (L, D) f32
        attn_ref[:, h * D:(h + 1) * D] = oh.astype(attn_ref.dtype)

    # ---- head merge + out-projection: ONE full-K(=E) MXU matmul ------------
    o_ref[0] = (
        jnp.dot(
            attn_ref[...], w_out_ref[...], preferred_element_type=jnp.float32
        )
        + b_out_ref[...]
    ).astype(o_ref.dtype)


# ---------------------------------------------------------------------------
# Wrapper: reproduces SelfAttentionLayer.forward == attention(x, x, x, mask)[0]
# ---------------------------------------------------------------------------
def self_attention_layer(x, params, mask, num_heads, *, mxu_dtype=jnp.float32):
    w_in, b_in, w_out, b_out = params
    N, L, E = x.shape
    D = E // num_heads
    scale = 1.0 / math.sqrt(D)

    # One-time weight preparation (would be constant-folded under jit):
    #  * transpose to (K, N) so the MXU consumes them directly,
    #  * fold the 1/sqrt(D) query scaling into the q part of w_in / b_in,
    #  * cast MXU operands to mxu_dtype (bf16 recommended on v6e/v7x).
    w_in_t = jnp.transpose(w_in).at[:, :E].multiply(scale).astype(mxu_dtype)
    w_out_t = jnp.transpose(w_out).astype(mxu_dtype)
    b_in2 = b_in.at[:E].multiply(scale).reshape(1, 3 * E).astype(jnp.float32)
    b_out2 = b_out.reshape(1, E).astype(jnp.float32)
    mask_f32 = mask.astype(jnp.float32)

    # Advisory cost estimate so XLA schedules neighbours around the call.
    flops = 2 * N * L * (3 * E * E + 2 * L * E + E * E)
    w_itemsize = jnp.dtype(mxu_dtype).itemsize
    bytes_accessed = (
        x.size * x.dtype.itemsize                       # x in
        + (w_in_t.size + w_out_t.size) * w_itemsize     # weights
        + (b_in2.size + b_out2.size + mask_f32.size) * 4
        + N * L * E * x.dtype.itemsize                  # output
    )
    cost = pl.CostEstimate(
        flops=int(flops),
        transcendentals=int(N * num_heads * L * L),
        bytes_accessed=int(bytes_accessed),
    )

    kern = functools.partial(_fused_self_attention_kernel, num_heads=num_heads)
    return pl.pallas_call(
        kern,
        out_shape=jax.ShapeDtypeStruct((N, L, E), x.dtype),
        grid=(N,),
        in_specs=[
            pl.BlockSpec((1, L, E), lambda b: (b, 0, 0)),       # x (per batch)
            pl.BlockSpec((E, 3 * E), lambda b: (0, 0)),         # w_in^T
            pl.BlockSpec((1, 3 * E), lambda b: (0, 0)),         # b_in
            pl.BlockSpec((E, E), lambda b: (0, 0)),             # w_out^T
            pl.BlockSpec((1, E), lambda b: (0, 0)),             # b_out
            pl.BlockSpec((L, L), lambda b: (0, 0)),             # attn mask
        ],
        out_specs=pl.BlockSpec((1, L, E), lambda b: (b, 0, 0)),
        scratch_shapes=[
            pltpu.VMEM((L, 3 * E), mxu_dtype),   # qkv slab
            pltpu.VMEM((L, E), mxu_dtype),       # merged head outputs
        ],
        compiler_params=pltpu.CompilerParams(
            dimension_semantics=("parallel",)
        ),
        cost_estimate=cost,
    )(x, w_in_t, b_in2, w_out_t, b_out2, mask_f32)


# ---------------------------------------------------------------------------
# Pure-JAX reference matching PyTorch nn.MultiheadAttention semantics.
# ---------------------------------------------------------------------------
def _reference(x, params, mask, num_heads):
    w_in, b_in, w_out, b_out = params
    N, L, E = x.shape
    D = E // num_heads
    qkv = x.reshape(N * L, E) @ w_in.T + b_in
    qkv = qkv.reshape(N, L, 3, num_heads, D)
    q = qkv[:, :, 0].transpose(0, 2, 1, 3)
    k = qkv[:, :, 1].transpose(0, 2, 1, 3)
    v = qkv[:, :, 2].transpose(0, 2, 1, 3)
    s = jnp.einsum("nhqd,nhkd->nhqk", q, k) / jnp.sqrt(jnp.float32(D)) + mask
    p = jax.nn.softmax(s, axis=-1)
    o = jnp.einsum("nhqk,nhkd->nhqd", p, v).transpose(0, 2, 1, 3).reshape(N * L, E)
    return (o @ w_out.T + b_out).reshape(N, L, E)


if __name__ == "__main__":
    # Small shapes consistent with the module: batch=2, seq=8, embed=32, heads=4.
    N, L, E, H = 2, 8, 32, 4

    key = jax.random.PRNGKey(0)
    k1, k2, k3, k4, k5 = jax.random.split(key, 5)
    w_in = jax.random.normal(k1, (3 * E, E), jnp.float32) * 0.1   # in_proj_weight
    b_in = jax.random.normal(k2, (3 * E,), jnp.float32) * 0.1     # in_proj_bias
    w_out = jax.random.normal(k3, (E, E), jnp.float32) * 0.1      # out_proj.weight
    b_out = jax.random.normal(k4, (E,), jnp.float32) * 0.1        # out_proj.bias
    params = (w_in, b_in, w_out, b_out)

    # Float additive attn_mask (causal), same as passing a float mask to PyTorch.
    causal = jnp.tril(jnp.ones((L, L), dtype=bool))
    mask = jnp.where(causal, 0.0, -1e9).astype(jnp.float32)

    x = jax.random.normal(k5, (N, L, E), jnp.float32)

    ref = _reference(x, params, mask, H)

    # f32 MXU operands (reference-accurate path).
    out = jax.block_until_ready(self_attention_layer(x, params, mask, H))
    assert out.shape == (N, L, E)
    # Tolerance reflects the EUP approximate reciprocal in the softmax denom.
    assert jnp.allclose(out, ref, atol=2e-3, rtol=2e-3), "f32 path mismatch"

    # bf16 MXU operands with f32 accumulation (recommended on v6e/v7x).
    out_bf16 = jax.block_until_ready(
        self_attention_layer(x, params, mask, H, mxu_dtype=jnp.bfloat16)
    )
    assert jnp.allclose(out_bf16, ref, atol=3e-2, rtol=3e-2), "bf16 path mismatch"

    print("KERNEL_OK")
</pallas_src>

<mosaic_0001>
module attributes {stable_mosaic.version = 11 : i64} {
  func.func @_fused_self_attention_kernel(%arg0: i32, %arg1: memref<1x8x32xf32, #tpu.memory_space<vmem>>, %arg2: memref<32x96xf32, #tpu.memory_space<vmem>>, %arg3: memref<1x96xf32, #tpu.memory_space<vmem>>, %arg4: memref<32x32xf32, #tpu.memory_space<vmem>>, %arg5: memref<1x32xf32, #tpu.memory_space<vmem>>, %arg6: memref<8x8xf32, #tpu.memory_space<vmem>>, %arg7: memref<1x8x32xf32, #tpu.memory_space<vmem>>, %arg8: memref<8x96xf32, #tpu.memory_space<vmem>>, %arg9: memref<8x32xf32, #tpu.memory_space<vmem>>) attributes {dimension_semantics = [#tpu.dimension_semantics<parallel>], iteration_bounds = array<i64: 2>, scalar_prefetch = 0 : i64, scratch_operands = 2 : i64, tpu.core_type = #tpu.core_type<tc>, window_params = [{transform_indices = @transform_0, window_bounds = array<i64: 1, 8, 32>}, {pipeline_mode = #tpu.pipeline_mode<synchronous>, transform_indices = @transform_1, window_bounds = array<i64: 32, 96>}, {pipeline_mode = #tpu.pipeline_mode<synchronous>, transform_indices = @transform_2, window_bounds = array<i64: 1, 96>}, {pipeline_mode = #tpu.pipeline_mode<synchronous>, transform_indices = @transform_3, window_bounds = array<i64: 32, 32>}, {pipeline_mode = #tpu.pipeline_mode<synchronous>, transform_indices = @transform_4, window_bounds = array<i64: 1, 32>}, {pipeline_mode = #tpu.pipeline_mode<synchronous>, transform_indices = @transform_5, window_bounds = array<i64: 8, 8>}, {transform_indices = @transform_6, window_bounds = array<i64: 1, 8, 32>}]} {
    %c0 = arith.constant 0 : index
    %c0_0 = arith.constant 0 : index
    %c0_1 = arith.constant 0 : index
    %0 = vector.load %arg1[%c0, %c0_0, %c0_1] : memref<1x8x32xf32, #tpu.memory_space<vmem>>, vector<1x8x32xf32>
    %1 = vector.shape_cast %0 : vector<1x8x32xf32> to vector<8x32xf32>
    %c0_2 = arith.constant 0 : index
    %c0_3 = arith.constant 0 : index
    %2 = vector.load %arg2[%c0_2, %c0_3] : memref<32x96xf32, #tpu.memory_space<vmem>>, vector<32x96xf32>
    %cst = arith.constant dense<0.000000e+00> : vector<8x96xf32>
    %3 = tpu.matmul %1, %2, %cst {dimension_numbers = #tpu.dot_dimension_numbers<[1], [0], [0], [1], [0, 0, 1, 1], [], []>} : vector<8x32xf32>, vector<32x96xf32>, vector<8x96xf32> -> vector<8x96xf32>
    %c0_4 = arith.constant 0 : index
    %c0_5 = arith.constant 0 : index
    %4 = vector.load %arg3[%c0_4, %c0_5] : memref<1x96xf32, #tpu.memory_space<vmem>>, vector<1x96xf32>
    %5 = vector.broadcast %4 : vector<1x96xf32> to vector<8x96xf32>
    %6 = arith.addf %3, %5 : vector<8x96xf32>
    %c0_6 = arith.constant 0 : index
    %c0_7 = arith.constant 0 : index
    %7 = vector.load %arg8[%c0_6, %c0_7] : memref<8x96xf32, #tpu.memory_space<vmem>>, vector<8x96xf32>
    tpu.vector_store %arg8[%c0_6, %c0_7], %6 {strides = array<i32>} : memref<8x96xf32, #tpu.memory_space<vmem>>, vector<8x96xf32>,
    %c0_8 = arith.constant 0 : index
    %c0_9 = arith.constant 0 : index
    %8 = vector.load %arg8[%c0_8, %c0_9] : memref<8x96xf32, #tpu.memory_space<vmem>>, vector<8x8xf32>
    %c0_10 = arith.constant 0 : index
    %c32 = arith.constant 32 : index
    %9 = vector.load %arg8[%c0_10, %c32] : memref<8x96xf32, #tpu.memory_space<vmem>>, vector<8x8xf32>
    %c0_11 = arith.constant 0 : index
    %c64 = arith.constant 64 : index
    %10 = vector.load %arg8[%c0_11, %c64] : memref<8x96xf32, #tpu.memory_space<vmem>>, vector<8x8xf32>
    %cst_12 = arith.constant dense<0.000000e+00> : vector<8x8xf32>
    %11 = tpu.matmul %8, %9, %cst_12 {dimension_numbers = #tpu.dot_dimension_numbers<[1], [1], [0], [0], [0, 0, 1, 0], [], []>} : vector<8x8xf32>, vector<8x8xf32>, vector<8x8xf32> -> vector<8x8xf32>
    %c0_13 = arith.constant 0 : index
    %c0_14 = arith.constant 0 : index
    %12 = vector.load %arg6[%c0_13, %c0_14] : memref<8x8xf32, #tpu.memory_space<vmem>>, vector<8x8xf32>
    %13 = arith.addf %11, %12 : vector<8x8xf32>
    %cst_15 = arith.constant dense<0xFF800000> : vector<8xf32>
    %14 = vector.multi_reduction <maximumf>, %13, %cst_15 [1] : vector<8x8xf32> to vector<8xf32>
    %15 = vector.shape_cast %14 : vector<8xf32> to vector<8x1xf32>
    %16 = vector.broadcast %15 : vector<8x1xf32> to vector<8x8xf32>
    %17 = arith.subf %13, %16 : vector<8x8xf32>
    %18 = math.exp %17 : vector<8x8xf32>
    %cst_16 = arith.constant dense<0.000000e+00> : vector<8xf32>
    %19 = vector.multi_reduction <add>, %18, %cst_16 [1] : vector<8x8xf32> to vector<8xf32>
    %20 = vector.shape_cast %19 : vector<8xf32> to vector<8x1xf32>
    %21 = tpu.reciprocal %20 {approx = true} : vector<8x1xf32> -> vector<8x1xf32>
    %cst_17 = arith.constant dense<0.000000e+00> : vector<8x8xf32>
    %22 = tpu.matmul %18, %10, %cst_17 {dimension_numbers = #tpu.dot_dimension_numbers<[1], [0], [0], [1], [0, 0, 1, 1], [], []>} : vector<8x8xf32>, vector<8x8xf32>, vector<8x8xf32> -> vector<8x8xf32>
    %23 = vector.broadcast %21 : vector<8x1xf32> to vector<8x8xf32>
    %24 = arith.mulf %22, %23 : vector<8x8xf32>
    %c0_18 = arith.constant 0 : index
    %c0_19 = arith.constant 0 : index
    %25 = vector.load %arg9[%c0_18, %c0_19] : memref<8x32xf32, #tpu.memory_space<vmem>>, vector<8x8xf32>
    tpu.vector_store %arg9[%c0_18, %c0_19], %24 {strides = array<i32>} : memref<8x32xf32, #tpu.memory_space<vmem>>, vector<8x8xf32>,
    %c0_20 = arith.constant 0 : index
    %c8 = arith.constant 8 : index
    %26 = vector.load %arg8[%c0_20, %c8] : memref<8x96xf32, #tpu.memory_space<vmem>>, vector<8x8xf32>
    %c0_21 = arith.constant 0 : index
    %c40 = arith.constant 40 : index
    %27 = vector.load %arg8[%c0_21, %c40] : memref<8x96xf32, #tpu.memory_space<vmem>>, vector<8x8xf32>
    %c0_22 = arith.constant 0 : index
    %c72 = arith.constant 72 : index
    %28 = vector.load %arg8[%c0_22, %c72] : memref<8x96xf32, #tpu.memory_space<vmem>>, vector<8x8xf32>
    %cst_23 = arith.constant dense<0.000000e+00> : vector<8x8xf32>
    %29 = tpu.matmul %26, %27, %cst_23 {dimension_numbers = #tpu.dot_dimension_numbers<[1], [1], [0], [0], [0, 0, 1, 0], [], []>} : vector<8x8xf32>, vector<8x8xf32>, vector<8x8xf32> -> vector<8x8xf32>
    %c0_24 = arith.constant 0 : index
    %c0_25 = arith.constant 0 : index
    %30 = vector.load %arg6[%c0_24, %c0_25] : memref<8x8xf32, #tpu.memory_space<vmem>>, vector<8x8xf32>
    %31 = arith.addf %29, %30 : vector<8x8xf32>
    %cst_26 = arith.constant dense<0xFF800000> : vector<8xf32>
    %32 = vector.multi_reduction <maximumf>, %31, %cst_26 [1] : vector<8x8xf32> to vector<8xf32>
    %33 = vector.shape_cast %32 : vector<8xf32> to vector<8x1xf32>
    %34 = vector.broadcast %33 : vector<8x1xf32> to vector<8x8xf32>
    %35 = arith.subf %31, %34 : vector<8x8xf32>
    %36 = math.exp %35 : vector<8x8xf32>
    %cst_27 = arith.constant dense<0.000000e+00> : vector<8xf32>
    %37 = vector.multi_reduction <add>, %36, %cst_27 [1] : vector<8x8xf32> to vector<8xf32>
    %38 = vector.shape_cast %37 : vector<8xf32> to vector<8x1xf32>
    %39 = tpu.reciprocal %38 {approx = true} : vector<8x1xf32> -> vector<8x1xf32>
    %cst_28 = arith.constant dense<0.000000e+00> : vector<8x8xf32>
    %40 = tpu.matmul %36, %28, %cst_28 {dimension_numbers = #tpu.dot_dimension_numbers<[1], [0], [0], [1], [0, 0, 1, 1], [], []>} : vector<8x8xf32>, vector<8x8xf32>, vector<8x8xf32> -> vector<8x8xf32>
    %41 = vector.broadcast %39 : vector<8x1xf32> to vector<8x8xf32>
    %42 = arith.mulf %40, %41 : vector<8x8xf32>
    %c0_29 = arith.constant 0 : index
    %c8_30 = arith.constant 8 : index
    %43 = vector.load %arg9[%c0_29, %c8_30] : memref<8x32xf32, #tpu.memory_space<vmem>>, vector<8x8xf32>
    tpu.vector_store %arg9[%c0_29, %c8_30], %42 {strides = array<i32>} : memref<8x32xf32, #tpu.memory_space<vmem>>, vector<8x8xf32>,
    %c0_31 = arith.constant 0 : index
    %c16 = arith.constant 16 : index
    %44 = vector.load %arg8[%c0_31, %c16] : memref<8x96xf32, #tpu.memory_space<vmem>>, vector<8x8xf32>
    %c0_32 = arith.constant 0 : index
    %c48 = arith.constant 48 : index
    %45 = vector.load %arg8[%c0_32, %c48] : memref<8x96xf32, #tpu.memory_space<vmem>>, vector<8x8xf32>
    %c0_33 = arith.constant 0 : index
    %c80 = arith.constant 80 : index
    %46 = vector.load %arg8[%c0_33, %c80] : memref<8x96xf32, #tpu.memory_space<vmem>>, vector<8x8xf32>
    %cst_34 = arith.constant dense<0.000000e+00> : vector<8x8xf32>
    %47 = tpu.matmul %44, %45, %cst_34 {dimension_numbers = #tpu.dot_dimension_numbers<[1], [1], [0], [0], [0, 0, 1, 0], [], []>} : vector<8x8xf32>, vector<8x8xf32>, vector<8x8xf32> -> vector<8x8xf32>
    %c0_35 = arith.constant 0 : index
    %c0_36 = arith.constant 0 : index
    %48 = vector.load %arg6[%c0_35, %c0_36] : memref<8x8xf32, #tpu.memory_space<vmem>>, vector<8x8xf32>
    %49 = arith.addf %47, %48 : vector<8x8xf32>
    %cst_37 = arith.constant dense<0xFF800000> : vector<8xf32>
    %50 = vector.multi_reduction <maximumf>, %49, %cst_37 [1] : vector<8x8xf32> to vector<8xf32>
    %51 = vector.shape_cast %50 : vector<8xf32> to vector<8x1xf32>
    %52 = vector.broadcast %51 : vector<8x1xf32> to vector<8x8xf32>
    %53 = arith.subf %49, %52 : vector<8x8xf32>
    %54 = math.exp %53 : vector<8x8xf32>
    %cst_38 = arith.constant dense<0.000000e+00> : vector<8xf32>
    %55 = vector.multi_reduction <add>, %54, %cst_38 [1] : vector<8x8xf32> to vector<8xf32>
    %56 = vector.shape_cast %55 : vector<8xf32> to vector<8x1xf32>
    %57 = tpu.reciprocal %56 {approx = true} : vector<8x1xf32> -> vector<8x1xf32>
    %cst_39 = arith.constant dense<0.000000e+00> : vector<8x8xf32>
    %58 = tpu.matmul %54, %46, %cst_39 {dimension_numbers = #tpu.dot_dimension_numbers<[1], [0], [0], [1], [0, 0, 1, 1], [], []>} : vector<8x8xf32>, vector<8x8xf32>, vector<8x8xf32> -> vector<8x8xf32>
    %59 = vector.broadcast %57 : vector<8x1xf32> to vector<8x8xf32>
    %60 = arith.mulf %58, %59 : vector<8x8xf32>
    %c0_40 = arith.constant 0 : index
    %c16_41 = arith.constant 16 : index
    %61 = vector.load %arg9[%c0_40, %c16_41] : memref<8x32xf32, #tpu.memory_space<vmem>>, vector<8x8xf32>
    tpu.vector_store %arg9[%c0_40, %c16_41], %60 {strides = array<i32>} : memref<8x32xf32, #tpu.memory_space<vmem>>, vector<8x8xf32>,
    %c0_42 = arith.constant 0 : index
    %c24 = arith.constant 24 : index
    %62 = vector.load %arg8[%c0_42, %c24] : memref<8x96xf32, #tpu.memory_space<vmem>>, vector<8x8xf32>
    %c0_43 = arith.constant 0 : index
    %c56 = arith.constant 56 : index
    %63 = vector.load %arg8[%c0_43, %c56] : memref<8x96xf32, #tpu.memory_space<vmem>>, vector<8x8xf32>
    %c0_44 = arith.constant 0 : index
    %c88 = arith.constant 88 : index
    %64 = vector.load %arg8[%c0_44, %c88] : memref<8x96xf32, #tpu.memory_space<vmem>>, vector<8x8xf32>
    %cst_45 = arith.constant dense<0.000000e+00> : vector<8x8xf32>
    %65 = tpu.matmul %62, %63, %cst_45 {dimension_numbers = #tpu.dot_dimension_numbers<[1], [1], [0], [0], [0, 0, 1, 0], [], []>} : vector<8x8xf32>, vector<8x8xf32>, vector<8x8xf32> -> vector<8x8xf32>
    %c0_46 = arith.constant 0 : index
    %c0_47 = arith.constant 0 : index
    %66 = vector.load %arg6[%c0_46, %c0_47] : memref<8x8xf32, #tpu.memory_space<vmem>>, vector<8x8xf32>
    %67 = arith.addf %65, %66 : vector<8x8xf32>
    %cst_48 = arith.constant dense<0xFF800000> : vector<8xf32>
    %68 = vector.multi_reduction <maximumf>, %67, %cst_48 [1] : vector<8x8xf32> to vector<8xf32>
    %69 = vector.shape_cast %68 : vector<8xf32> to vector<8x1xf32>
    %70 = vector.broadcast %69 : vector<8x1xf32> to vector<8x8xf32>
    %71 = arith.subf %67, %70 : vector<8x8xf32>
    %72 = math.exp %71 : vector<8x8xf32>
    %cst_49 = arith.constant dense<0.000000e+00> : vector<8xf32>
    %73 = vector.multi_reduction <add>, %72, %cst_49 [1] : vector<8x8xf32> to vector<8xf32>
    %74 = vector.shape_cast %73 : vector<8xf32> to vector<8x1xf32>
    %75 = tpu.reciprocal %74 {approx = true} : vector<8x1xf32> -> vector<8x1xf32>
    %cst_50 = arith.constant dense<0.000000e+00> : vector<8x8xf32>
    %76 = tpu.matmul %72, %64, %cst_50 {dimension_numbers = #tpu.dot_dimension_numbers<[1], [0], [0], [1], [0, 0, 1, 1], [], []>} : vector<8x8xf32>, vector<8x8xf32>, vector<8x8xf32> -> vector<8x8xf32>
    %77 = vector.broadcast %75 : vector<8x1xf32> to vector<8x8xf32>
    %78 = arith.mulf %76, %77 : vector<8x8xf32>
    %c0_51 = arith.constant 0 : index
    %c24_52 = arith.constant 24 : index
    %79 = vector.load %arg9[%c0_51, %c24_52] : memref<8x32xf32, #tpu.memory_space<vmem>>, vector<8x8xf32>
    tpu.vector_store %arg9[%c0_51, %c24_52], %78 {strides = array<i32>} : memref<8x32xf32, #tpu.memory_space<vmem>>, vector<8x8xf32>,
    %c0_53 = arith.constant 0 : index
    %c0_54 = arith.constant 0 : index
    %80 = vector.load %arg9[%c0_53, %c0_54] : memref<8x32xf32, #tpu.memory_space<vmem>>, vector<8x32xf32>
    %c0_55 = arith.constant 0 : index
    %c0_56 = arith.constant 0 : index
    %81 = vector.load %arg4[%c0_55, %c0_56] : memref<32x32xf32, #tpu.memory_space<vmem>>, vector<32x32xf32>
    %cst_57 = arith.constant dense<0.000000e+00> : vector<8x32xf32>
    %82 = tpu.matmul %80, %81, %cst_57 {dimension_numbers = #tpu.dot_dimension_numbers<[1], [0], [0], [1], [0, 0, 1, 1], [], []>} : vector<8x32xf32>, vector<32x32xf32>, vector<8x32xf32> -> vector<8x32xf32>
    %c0_58 = arith.constant 0 : index
    %c0_59 = arith.constant 0 : index
    %83 = vector.load %arg5[%c0_58, %c0_59] : memref<1x32xf32, #tpu.memory_space<vmem>>, vector<1x32xf32>
    %84 = vector.broadcast %83 : vector<1x32xf32> to vector<8x32xf32>
    %85 = arith.addf %82, %84 : vector<8x32xf32>
    %c0_60 = arith.constant 0 : index
    %c0_61 = arith.constant 0 : index
    %c0_62 = arith.constant 0 : index
    %86 = vector.load %arg7[%c0_60, %c0_61, %c0_62] : memref<1x8x32xf32, #tpu.memory_space<vmem>>, vector<1x8x32xf32>
    %87 = vector.shape_cast %86 : vector<1x8x32xf32> to vector<8x32xf32>
    %88 = vector.shape_cast %85 : vector<8x32xf32> to vector<1x8x32xf32>
    tpu.vector_store %arg7[%c0_60, %c0_61, %c0_62], %88 {strides = array<i32>} : memref<1x8x32xf32, #tpu.memory_space<vmem>>, vector<1x8x32xf32>,
    return
  }
  func.func @transform_0(%arg0: i32) -> (i32, i32, i32) {
    %c0_i32 = arith.constant 0 : i32
    %c0_i32_0 = arith.constant 0 : i32
    %c0_i32_1 = arith.constant 0 : i32
    return %arg0, %c0_i32, %c0_i32_0 : i32, i32, i32
  }
  func.func @transform_1(%arg0: i32) -> (i32, i32) {
    %c0_i32 = arith.constant 0 : i32
    %c0_i32_0 = arith.constant 0 : i32
    %c0_i32_1 = arith.constant 0 : i32
    return %c0_i32, %c0_i32_0 : i32, i32
  }
  func.func @transform_2(%arg0: i32) -> (i32, i32) {
    %c0_i32 = arith.constant 0 : i32
    %c0_i32_0 = arith.constant 0 : i32
    %c0_i32_1 = arith.constant 0 : i32
    return %c0_i32, %c0_i32_0 : i32, i32
  }
  func.func @transform_3(%arg0: i32) -> (i32, i32) {
    %c0_i32 = arith.constant 0 : i32
    %c0_i32_0 = arith.constant 0 : i32
    %c0_i32_1 = arith.constant 0 : i32
    return %c0_i32, %c0_i32_0 : i32, i32
  }
  func.func @transform_4(%arg0: i32) -> (i32, i32) {
    %c0_i32 = arith.constant 0 : i32
    %c0_i32_0 = arith.constant 0 : i32
    %c0_i32_1 = arith.constant 0 : i32
    return %c0_i32, %c0_i32_0 : i32, i32
  }
  func.func @transform_5(%arg0: i32) -> (i32, i32) {
    %c0_i32 = arith.constant 0 : i32
    %c0_i32_0 = arith.constant 0 : i32
    %c0_i32_1 = arith.constant 0 : i32
    return %c0_i32, %c0_i32_0 : i32, i32
  }
  func.func @transform_6(%arg0: i32) -> (i32, i32, i32) {
    %c0_i32 = arith.constant 0 : i32
    %c0_i32_0 = arith.constant 0 : i32
    %c0_i32_1 = arith.constant 0 : i32
    return %arg0, %c0_i32, %c0_i32_0 : i32, i32, i32
  }
}

</mosaic_0001>

<llo_original>
// kernel: tpu_custom_call.1
$region0: #{tpu_custom_call.1}
  #allocation0 [shape = 'u32[]', space=smem, size = 0x4, offset = 0x4, fixed_abs, tag = 'smem constant byte address 0x4 - core index']
  #allocation1 [shape = 'u32[144,128]{1,0:T(1,128)}', space=vmem, size = 0x12000, scoped, tag = 'internal scratch']
  #allocation2 [shape = 'f32[8,96]{1,0:T(8,128)}', space=vmem, size = 0x1000, scoped, tag = 'scratch operand']
  #allocation3 [shape = 'f32[8,32]{1,0:T(8,128)}', space=vmem, size = 0x1000, scoped, tag = 'scratch operand']
  %s0 = inlined_call_operand.hbm [shape: f32[2,8,32], index: 0, kind: input, shape index: {}]
  %s1 = inlined_call_operand.hbm [shape: f32[32,96], index: 1, kind: input, shape index: {}]
  %s2 = inlined_call_operand.vmem [shape: f32[1,96], index: 2, kind: input, shape index: {}]
  %s3 = inlined_call_operand.hbm [shape: f32[32,32], index: 3, kind: input, shape index: {}]
  %s4 = inlined_call_operand.vmem [shape: f32[1,32], index: 4, kind: input, shape index: {}]
  %s5 = inlined_call_operand.vmem [shape: f32[8,8], index: 5, kind: input, shape index: {}]
  %s6 = inlined_call_operand.hbm [shape: f32[2,8,32], index: 6, kind: output, shape index: {}]
  %s7 = sld [smem:[#allocation0]]
  $region69: #{tpu_custom_call.1} parent=0
    _
  %s9 = ssub.s32 1, %s7
  %s10 = scalar_select 0, %s9, %s7
  $region1: #{tpu_custom_call.1} parent=0
    #allocation4 [shape = 'u8[8192]{0}', space=vmem, size = 0x2000, scoped, tag = 'input window, operand 0']
    #allocation5 [shape = 's32[2]{0}', space=sflag, size = 0x8, scoped, tag = 'scoped memory for tpu_custom_call.1']
    #allocation6 [shape = 's32[2]{0}', space=sflag, size = 0x8, scoped, tag = 'scoped memory for tpu_custom_call.1']
    #allocation7 [shape = 'u8[16384]{0}', space=vmem, size = 0x4000, scoped, tag = 'input window, operand 1, single buffered']
    #allocation8 [shape = 's32[1]{0}', space=sflag, size = 0x4, scoped, tag = 'scoped memory for tpu_custom_call.1']
    #allocation9 [shape = 'u8[16384]{0}', space=vmem, size = 0x4000, scoped, tag = 'input window, operand 3, single buffered']
    #allocation10 [shape = 'u8[8192]{0}', space=vmem, size = 0x2000, scoped, tag = 'output window, operand 0']
    %11 = vsyncpa [#allocation5], 0
    %s12 = scalar_lea.sflag [#allocation5], 1
    %13 = vsyncpa %s12, 0
    %14 = vsyncpa [#allocation8], 0
    %15 = vsyncpa [#allocation6], 0
    %s16 = scalar_lea.sflag [#allocation6], 1
    %17 = vsyncpa %s16, 0
    loop: start=0, step=1, limit=4
    $region2: #{tpu_custom_call.1} parent=1 // loop_pre_header
      _
    $region3: #{tpu_custom_call.1} parent=1 // loop_header
      %s19 = sphi 0, %s23
      %p20 = scmp.ge.s32.totalorder %s19, 4
      %s29 = sphi 0, %s31
      %s32 = sphi 0, %s29
      %s33 = sphi 0, %s32
      %s49 = sphi 0, %s33
      %s53 = sphi 0, %s53
      %s55 = sphi 0, %s53
      %s56 = sphi 0, %s55
      %s70 = sphi 0, %s56
      %s74 = sphi 0, %s74
      %s76 = sphi 0, %s74
      %s77 = sphi 0, %s76
      %s91 = sphi 0, %s77
      %s95 = sphi 0, %s95
      %s97 = sphi 0, %s95
      %s98 = sphi 0, %s97
      %s112 = sphi 0, %s98
      %s116 = sphi 0, %s116
      %s118 = sphi 0, %s116
      %s119 = sphi 0, %s118
      %s133 = sphi 0, %s119
      %s137 = sphi 0, %s137
      %s139 = sphi 0, %s137
      %s140 = sphi 0, %s139
      %s154 = sphi 0, %s140
      %s160 = sphi 0, %s162
      %s163 = sphi 0, %s160
      %s164 = sphi 0, %s163
      %s180 = sphi 0, %s164
    $region4: #{tpu_custom_call.1} parent=1 // loop_header_branch
      %22 = sbr.rel (%p20) target = $region8
    $region5: #{tpu_custom_call.1} parent=1 // loop_body
      %s24 = ssub.s32 %s19, 1
      %s25 = ssub.s32 %s19, 2
      %s26 = sadd.s32 %s19, 1
      %s27 = ssub.s32 %s19, %s26
      %p28 = scmp.eq.s32.totalorder %s27, 0
      %s30 = sadd.s32 %s29, 1
      %s31 = scalar_select %p28, %s29, %s30
      %p34 = pneg %p28
      %p35 = scmp.eq.s32.totalorder %s19, 1
      %p36 = por %p34, %p35
      %p37 = scmp.ne.s32.totalorder %s29, %s32
      %p38 = scmp.eq.s32.totalorder %s19, 0
      %p39 = por %p37, %p38
      %p40 = scmp.ne.s32.totalorder %s29, %s32
      %p41 = scmp.eq.s32.totalorder %s24, 1
      %p42 = por %p40, %p41
      %p43 = scmp.ne.s32.totalorder %s32, %s33
      %p44 = scmp.eq.s32.totalorder %s24, 0
      %p45 = por %p43, %p44
      %p46 = scmp.ne.s32.totalorder %s32, %s33
      %p47 = scmp.eq.s32.totalorder %s25, 1
      %p48 = por %p46, %p47
      %p50 = scmp.ne.s32.totalorder %s33, %s49
      %p51 = scmp.eq.s32.totalorder %s25, 0
      %p52 = por %p50, %p51
      %s54 = sadd.s32 %s53, 1
      %p57 = scmp.eq.s32.totalorder %s19, 1
      %p58 = scmp.ne.s32.totalorder %s53, %s55
      %p59 = scmp.eq.s32.totalorder %s19, 0
      %p60 = por %p58, %p59
      %p61 = scmp.ne.s32.totalorder %s53, %s55
      %p62 = scmp.eq.s32.totalorder %s24, 1
      %p63 = por %p61, %p62
      %p64 = scmp.ne.s32.totalorder %s55, %s56
      %p65 = scmp.eq.s32.totalorder %s24, 0
      %p66 = por %p64, %p65
      %p67 = scmp.ne.s32.totalorder %s55, %s56
      %p68 = scmp.eq.s32.totalorder %s25, 1
      %p69 = por %p67, %p68
      %p71 = scmp.ne.s32.totalorder %s56, %s70
      %p72 = scmp.eq.s32.totalorder %s25, 0
      %p73 = por %p71, %p72
      %s75 = sadd.s32 %s74, 1
      %p78 = scmp.eq.s32.totalorder %s19, 1
      %p79 = scmp.ne.s32.totalorder %s74, %s76
      %p80 = scmp.eq.s32.totalorder %s19, 0
      %p81 = por %p79, %p80
      %p82 = scmp.ne.s32.totalorder %s74, %s76
      %p83 = scmp.eq.s32.totalorder %s24, 1
      %p84 = por %p82, %p83
      %p85 = scmp.ne.s32.totalorder %s76, %s77
      %p86 = scmp.eq.s32.totalorder %s24, 0
      %p87 = por %p85, %p86
      %p88 = scmp.ne.s32.totalorder %s76, %s77
      %p89 = scmp.eq.s32.totalorder %s25, 1
      %p90 = por %p88, %p89
      %p92 = scmp.ne.s32.totalorder %s77, %s91
      %p93 = scmp.eq.s32.totalorder %s25, 0
      %p94 = por %p92, %p93
      %s96 = sadd.s32 %s95, 1
      %p99 = scmp.eq.s32.totalorder %s19, 1
      %p100 = scmp.ne.s32.totalorder %s95, %s97
      %p101 = scmp.eq.s32.totalorder %s19, 0
      %p102 = por %p100, %p101
      %p103 = scmp.ne.s32.totalorder %s95, %s97
      %p104 = scmp.eq.s32.totalorder %s24, 1
      %p105 = por %p103, %p104
      %p106 = scmp.ne.s32.totalorder %s97, %s98
      %p107 = scmp.eq.s32.totalorder %s24, 0
      %p108 = por %p106, %p107
      %p109 = scmp.ne.s32.totalorder %s97, %s98
      %p110 = scmp.eq.s32.totalorder %s25, 1
      %p111 = por %p109, %p110
      %p113 = scmp.ne.s32.totalorder %s98, %s112
      %p114 = scmp.eq.s32.totalorder %s25, 0
      %p115 = por %p113, %p114
      %s117 = sadd.s32 %s116, 1
      %p120 = scmp.eq.s32.totalorder %s19, 1
      %p121 = scmp.ne.s32.totalorder %s116, %s118
      %p122 = scmp.eq.s32.totalorder %s19, 0
      %p123 = por %p121, %p122
      %p124 = scmp.ne.s32.totalorder %s116, %s118
      %p125 = scmp.eq.s32.totalorder %s24, 1
      %p126 = por %p124, %p125
      %p127 = scmp.ne.s32.totalorder %s118, %s119
      %p128 = scmp.eq.s32.totalorder %s24, 0
      %p129 = por %p127, %p128
      %p130 = scmp.ne.s32.totalorder %s118, %s119
      %p131 = scmp.eq.s32.totalorder %s25, 1
      %p132 = por %p130, %p131
      %p134 = scmp.ne.s32.totalorder %s119, %s133
      %p135 = scmp.eq.s32.totalorder %s25, 0
      %p136 = por %p134, %p135
      %s138 = sadd.s32 %s137, 1
      %p141 = scmp.eq.s32.totalorder %s19, 1
      %p142 = scmp.ne.s32.totalorder %s137, %s139
      %p143 = scmp.eq.s32.totalorder %s19, 0
      %p144 = por %p142, %p143
      %p145 = scmp.ne.s32.totalorder %s137, %s139
      %p146 = scmp.eq.s32.totalorder %s24, 1
      %p147 = por %p145, %p146
      %p148 = scmp.ne.s32.totalorder %s139, %s140
      %p149 = scmp.eq.s32.totalorder %s24, 0
      %p150 = por %p148, %p149
      %p151 = scmp.ne.s32.totalorder %s139, %s140
      %p152 = scmp.eq.s32.totalorder %s25, 1
      %p153 = por %p151, %p152
      %p155 = scmp.ne.s32.totalorder %s140, %s154
      %p156 = scmp.eq.s32.totalorder %s25, 0
      %p157 = por %p155, %p156
      %s158 = ssub.s32 %s19, %s26
      %p159 = scmp.eq.s32.totalorder %s158, 0
      %s161 = sadd.s32 %s160, 1
      %s162 = scalar_select %p159, %s160, %s161
      %p165 = pneg %p159
      %p166 = scmp.eq.s32.totalorder %s19, 1
      %p167 = por %p165, %p166
      %p168 = scmp.ne.s32.totalorder %s160, %s163
      %p169 = scmp.eq.s32.totalorder %s19, 0
      %p170 = por %p168, %p169
      %p171 = scmp.ne.s32.totalorder %s160, %s163
      %p172 = scmp.eq.s32.totalorder %s24, 1
      %p173 = por %p171, %p172
      %p174 = scmp.ne.s32.totalorder %s163, %s164
      %p175 = scmp.eq.s32.totalorder %s24, 0
      %p176 = por %p174, %p175
      %p177 = scmp.ne.s32.totalorder %s163, %s164
      %p178 = scmp.eq.s32.totalorder %s25, 1
      %p179 = por %p177, %p178
      %p181 = scmp.ne.s32.totalorder %s164, %s180
      %p182 = scmp.eq.s32.totalorder %s25, 0
      %p183 = por %p181, %p182
      %p184 = scmp.le.s32.totalorder 1, %s19
      %p185 = scmp.lt.s32.totalorder %s19, 3
      %p186 = pnand %p184, %p185
      %p187 = pneg %p186
      // Predicated region
      $region9: #{tpu_custom_call.1} parent=5 // pred_check
        _
      $region10: #{tpu_custom_call.1} parent=5 // pred_check_branch
        %189 = sbr.rel (%p186) target = $region12
      $region11: #{tpu_custom_call.1} parent=5 // pred_region
        %s190 = ssub.s32 %s19, 1
        // Predicated region
        $region13: #{tpu_custom_call.1} parent=11 // pred_check
          %p191 = pneg %p66
        $region14: #{tpu_custom_call.1} parent=11 // pred_check_branch
          %193 = sbr.rel (%p191) target = $region16
        $region15: #{tpu_custom_call.1} parent=11 // pred_region
          %s195 = ssub.s32 512, 512
          %196 = vsyncadd [#allocation8], %s195
          %s197 = sshll.u32 [#allocation7], 4
          %s198 = int_to_ptr.vmem [resolvable:$true] %s197
          %203 = dma.hbm_to_vmem [thread:$0]  %s1, 512, %s198, [#allocation8], 128, 128, 8
        $region16: #{tpu_custom_call.1} parent=11 // pred_fallthru
          _
        // Predicated region
        $region17: #{tpu_custom_call.1} parent=11 // pred_check
          %p204 = pneg %p87
        $region18: #{tpu_custom_call.1} parent=11 // pred_check_branch
          %206 = sbr.rel (%p204) target = $region20
        $region19: #{tpu_custom_call.1} parent=11 // pred_region
          _
        $region20: #{tpu_custom_call.1} parent=11 // pred_fallthru
          _
        // Predicated region
        $region21: #{tpu_custom_call.1} parent=11 // pred_check
          %p207 = pneg %p108
        $region22: #{tpu_custom_call.1} parent=11 // pred_check_branch
          %209 = sbr.rel (%p207) target = $region24
        $region23: #{tpu_custom_call.1} parent=11 // pred_region
          %s211 = ssub.s32 512, 512
          %212 = vsyncadd [#allocation8], %s211
          %s213 = sshll.u32 [#allocation9], 4
          %s214 = int_to_ptr.vmem [resolvable:$true] %s213
          %219 = dma.hbm_to_vmem [thread:$0]  %s3, 512, %s214, [#allocation8], 128, 128, 8
        $region24: #{tpu_custom_call.1} parent=11 // pred_fallthru
          _
        // Predicated region
        $region25: #{tpu_custom_call.1} parent=11 // pred_check
          %p220 = pneg %p129
        $region26: #{tpu_custom_call.1} parent=11 // pred_check_branch
          %222 = sbr.rel (%p220) target = $region28
        $region27: #{tpu_custom_call.1} parent=11 // pred_region
          _
        $region28: #{tpu_custom_call.1} parent=11 // pred_fallthru
          _
        // Predicated region
        $region29: #{tpu_custom_call.1} parent=11 // pred_check
          %p223 = pneg %p150
        $region30: #{tpu_custom_call.1} parent=11 // pred_check_branch
          %225 = sbr.rel (%p223) target = $region32
        $region31: #{tpu_custom_call.1} parent=11 // pred_region
          _
        $region32: #{tpu_custom_call.1} parent=11 // pred_fallthru
          _
      $region12: #{tpu_custom_call.1} parent=5 // pred_fallthru
        _
      %p226 = scmp.lt.s32.totalorder %s19, 2
      // Predicated region
      $region33: #{tpu_custom_call.1} parent=5 // pred_check
        %p227 = pneg %p226
      $region34: #{tpu_custom_call.1} parent=5 // pred_check_branch
        %229 = sbr.rel (%p227) target = $region36
      $region35: #{tpu_custom_call.1} parent=5 // pred_region
        // Predicated region
        $region37: #{tpu_custom_call.1} parent=35 // pred_check
          %p230 = pneg %p39
        $region38: #{tpu_custom_call.1} parent=35 // pred_check_branch
          %232 = sbr.rel (%p230) target = $region40
        $region39: #{tpu_custom_call.1} parent=35 // pred_region
          %s233 = sand.u32 %s29, 1
          %s234 = scalar_lea.sflag [#allocation5], %s233
          %s235 = sand.u32 %s29, 1
          %s236 = smul.addr %s235, 8
          %s237 = scalar_lea.vmem [#allocation4], %s236
          %s239 = ssub.s32 128, 128
          %240 = vsyncadd %s234, %s239
          %s241 = smul.addr %s19, 128
          %s242 = scalar_lea.hbm %s0, %s241
          %s244 = sshll.u32 %s237, 4
          %s245 = int_to_ptr.vmem [resolvable:$true] %s244
          %247 = dma.hbm_to_vmem [thread:$0]  %s242, 128, %s245, %s234
        $region40: #{tpu_custom_call.1} parent=35 // pred_fallthru
          _
      $region36: #{tpu_custom_call.1} parent=5 // pred_fallthru
        _
      %p248 = scmp.le.s32.totalorder 1, %s19
      %p249 = scmp.lt.s32.totalorder %s19, 3
      %p250 = pnand %p248, %p249
      %p251 = pneg %p250
      // Predicated region
      $region41: #{tpu_custom_call.1} parent=5 // pred_check
        _
      $region42: #{tpu_custom_call.1} parent=5 // pred_check_branch
        %253 = sbr.rel (%p250) target = $region44
      $region43: #{tpu_custom_call.1} parent=5 // pred_region
        %s254 = ssub.s32 %s19, 1
        %s255 = sand.u32 %s32, 1
        %s256 = scalar_lea.sflag [#allocation5], %s255
        %s257 = sand.u32 %s32, 1
        %s258 = smul.addr %s257, 8
        %s259 = scalar_lea.vmem [#allocation4], %s258
        // Predicated region
        $region45: #{tpu_custom_call.1} parent=43 // pred_check
          %p260 = pneg %p45
        $region46: #{tpu_custom_call.1} parent=43 // pred_check_branch
          %262 = sbr.rel (%p260) target = $region48
        $region47: #{tpu_custom_call.1} parent=43 // pred_region
          %263 = dma.done %s256, 128
        $region48: #{tpu_custom_call.1} parent=43 // pred_fallthru
          _
        // Predicated region
        $region49: #{tpu_custom_call.1} parent=43 // pred_check
          %p264 = pneg %p66
        $region50: #{tpu_custom_call.1} parent=43 // pred_check_branch
          %266 = sbr.rel (%p264) target = $region52
        $region51: #{tpu_custom_call.1} parent=43 // pred_region
          %267 = dma.done [#allocation8], 512
        $region52: #{tpu_custom_call.1} parent=43 // pred_fallthru
          _
        // Predicated region
        $region53: #{tpu_custom_call.1} parent=43 // pred_check
          %p268 = pneg %p108
        $region54: #{tpu_custom_call.1} parent=43 // pred_check_branch
          %270 = sbr.rel (%p268) target = $region56
        $region55: #{tpu_custom_call.1} parent=43 // pred_region
          %271 = dma.done [#allocation8], 512
        $region56: #{tpu_custom_call.1} parent=43 // pred_fallthru
          _
        %s272 = sand.u32 %s32, 1
        %s273 = scalar_lea.sflag [#allocation5], %s272
        %s274 = sand.u32 %s32, 1
        %s275 = smul.addr %s274, 8
        %s276 = scalar_lea.vmem [#allocation4], %s275
        %p277 = pneg %p45
        %p278 = pneg %p42
        %p279 = pneg %p66
        %p280 = pneg %p63
        %p281 = pneg %p87
        %p282 = pneg %p84
        %p283 = pneg %p108
        %p284 = pneg %p105
        %p285 = pneg %p129
        %p286 = pneg %p126
        %p287 = pneg %p150
        %p288 = pneg %p147
        %p289 = pneg %p176
        %p290 = pneg %p173
        %s291 = sand.u32 %s163, 1
        %s292 = scalar_lea.sflag [#allocation6], %s291
        %s293 = sand.u32 %s163, 1
        %s294 = smul.addr %s293, 8
        %s295 = scalar_lea.vmem [#allocation10], %s294
        %v296 = vld [vmem:[%s259] sm:$0xff]
        %v297 = vld [vmem:[#allocation7] sm:$0xff]
        %v298 = vld [vmem:[#allocation7 + $0x8] sm:$0xff]
        %v299 = vld [vmem:[#allocation7 + $0x10] sm:$0xff]
        %v300 = vld [vmem:[#allocation7 + $0x18] sm:$0xff]
        %v301 = vld [vmem:[%s2] sm:$0x1]
        %v303 = vlaneseq
        %v304 = vshrl.u32 %v303, 7
        %v305 = vsub.s32 0, %v304
        %v306 = vrot.slane %v301, %v305
        %vm308 = vcmask 261120
        %v310 = vsel %vm308, %v296, 0
        %312 = vmatprep.subr.mxu0 0.0
        %313 = vmatpush1.msra.mxu0 %v297
        %314 = vmatprep.subr.mxu0 0.0
        %315 = vmatpush1.msra.mxu0 %v298
        %316 = vmatprep.subr.mxu0 0.0
        %317 = vmatpush1.msra.mxu0 %v299
        %318 = vmatprep.subr.mxu0 0.0
        %319 = vmatpush1.msra.mxu0 %v300
        %320 = vmatprep.subr.mxu0 0.0
        %321 = vmatpush1.msra.mxu0 0.0
        %322 = vmatprep.subr.mxu0 0.0
        %323 = vmatpush1.msra.mxu0 0.0
        %324 = vmatprep.subr.mxu0 0.0
        %325 = vmatpush1.msra.mxu0 0.0
        %326 = vmatprep.subr.mxu0 0.0
        %327 = vmatpush1.msra.mxu0 0.0
        %328 = vmatprep.subr.mxu0 0.0
        %329 = vmatpush1.msra.mxu0 0.0
        %330 = vmatprep.subr.mxu0 0.0
        %331 = vmatpush1.msra.mxu0 0.0
        %332 = vmatprep.subr.mxu0 0.0
        %333 = vmatpush1.msra.mxu0 0.0
        %334 = vmatprep.subr.mxu0 0.0
        %335 = vmatpush1.msra.mxu0 0.0
        %336 = vmatprep.subr.mxu0 0.0
        %337 = vmatpush1.msra.mxu0 0.0
        %338 = vmatprep.subr.mxu0 0.0
        %339 = vmatpush1.msra.mxu0 0.0
        %340 = vmatprep.subr.mxu0 0.0
        %341 = vmatpush1.msra.mxu0 0.0
        %342 = vmatprep.subr.mxu0 0.0
        %343 = vmatpush1.msra.mxu0 0.0
        %344 = vmatprep.subr.mxu0 0.0
        %345 = vmatpush1.msra.mxu0 0.0
        %346 = vmatprep.subr.mxu0 0.0
        %347 = vmatpush1.msra.mxu0 0.0
        %348 = vmatprep.subr.mxu0 0.0
        %349 = vmatpush1.msra.mxu0 0.0
        %350 = vmatprep.subr.mxu0 0.0
        %351 = vmatpush1.msra.mxu0 0.0
        %352 = vmatprep.subr.mxu0 0.0
        %353 = vmatpush1.msra.mxu0 0.0
        %354 = vmatprep.subr.mxu0 0.0
        %355 = vmatpush1.msra.mxu0 0.0
        %356 = vmatprep.subr.mxu0 0.0
        %357 = vmatpush1.msra.mxu0 0.0
        %358 = vmatprep.subr.mxu0 0.0
        %359 = vmatpush1.msra.mxu0 0.0
        %360 = vmatprep.subr.mxu0 0.0
        %361 = vmatpush1.msra.mxu0 0.0
        %362 = vmatprep.subr.mxu0 0.0
        %363 = vmatpush1.msra.mxu0 0.0
        %364 = vmatprep.subr.mxu0 0.0
        %365 = vmatpush1.msra.mxu0 0.0
        %366 = vmatprep.subr.mxu0 0.0
        %367 = vmatpush1.msra.mxu0 0.0
        %368 = vmatprep.subr.mxu0 0.0
        %369 = vmatpush1.msra.mxu0 0.0
        %370 = vmatprep.subr.mxu0 0.0
        %371 = vmatpush1.msra.mxu0 0.0
        %372 = vmatprep.subr.mxu0 0.0
        %373 = vmatpush1.msra.mxu0 0.0
        %374 = vmatprep.subr.mxu0 0.0
        %375 = vmatpush1.msra.mxu0 0.0
        %376 = vmatprep.mubr.f32.mxu0 0.0
        %377 = vmatmul.mubr.f32.gmra.mrb[0].mxu0 %v310
        %v378 = vpop.f32.mrb[0].mxu0
        %v379 = vadd.f32 %v306, %v378
        %v380 = vpop.f32.mrb[0].mxu0
        %381 = vdwg.mxu0
        %vm382 = vcmask 785408
        %383 = vst.msk [vmem:[#allocation2] sm:$0xff] %vm382, %v379
        %v384 = vld [vmem:[#allocation2] sm:$0xff]
        %v385 = vld [vmem:[%s5] sm:$0xff]
        %387 = vrot.lane.b32.xlu0 %v384, 96
        %v388 = vpop.permute.xlu0 %387
        %vm389 = vcmask 64512
        %v390 = vsel %vm389, %v384, 0
        %v392 = vsel %vm389, %v388, 0
        %394 = vmatprep.subr.mxu0 0.0
        %395 = vmatpush1.xpose.msra.mxu0 %v392
        %396 = vmatprep.subr.mxu0 0.0
        %397 = vmatpush1.xpose.msra.mxu0 0.0
        %398 = vmatprep.subr.mxu0 0.0
        %399 = vmatpush1.xpose.msra.mxu0 0.0
        %400 = vmatprep.subr.mxu0 0.0
        %401 = vmatpush1.xpose.msra.mxu0 0.0
        %402 = vmatprep.subr.mxu0 0.0
        %403 = vmatpush1.xpose.msra.mxu0 0.0
        %404 = vmatprep.subr.mxu0 0.0
        %405 = vmatpush1.xpose.msra.mxu0 0.0
        %406 = vmatprep.subr.mxu0 0.0
        %407 = vmatpush1.xpose.msra.mxu0 0.0
        %408 = vmatprep.subr.mxu0 0.0
        %409 = vmatpush1.xpose.msra.mxu0 0.0
        %410 = vmatprep.subr.mxu0 0.0
        %411 = vmatpush1.xpose.msra.mxu0 0.0
        %412 = vmatprep.subr.mxu0 0.0
        %413 = vmatpush1.xpose.msra.mxu0 0.0
        %414 = vmatprep.subr.mxu0 0.0
        %415 = vmatpush1.xpose.msra.mxu0 0.0
        %416 = vmatprep.subr.mxu0 0.0
        %417 = vmatpush1.xpose.msra.mxu0 0.0
        %418 = vmatprep.subr.mxu0 0.0
        %419 = vmatpush1.xpose.msra.mxu0 0.0
        %420 = vmatprep.subr.mxu0 0.0
        %421 = vmatpush1.xpose.msra.mxu0 0.0
        %422 = vmatprep.subr.mxu0 0.0
        %423 = vmatpush1.xpose.msra.mxu0 0.0
        %424 = vmatprep.subr.mxu0 0.0
        %425 = vmatpush1.xpose.msra.mxu0 0.0
        %426 = vmatprep.subr.mxu0 0.0
        %427 = vmatpush1.xpose.msra.mxu0 0.0
        %428 = vmatprep.subr.mxu0 0.0
        %429 = vmatpush1.xpose.msra.mxu0 0.0
        %430 = vmatprep.subr.mxu0 0.0
        %431 = vmatpush1.xpose.msra.mxu0 0.0
        %432 = vmatprep.subr.mxu0 0.0
        %433 = vmatpush1.xpose.msra.mxu0 0.0
        %434 = vmatprep.subr.mxu0 0.0
        %435 = vmatpush1.xpose.msra.mxu0 0.0
        %436 = vmatprep.subr.mxu0 0.0
        %437 = vmatpush1.xpose.msra.mxu0 0.0
        %438 = vmatprep.subr.mxu0 0.0
        %439 = vmatpush1.xpose.msra.mxu0 0.0
        %440 = vmatprep.subr.mxu0 0.0
        %441 = vmatpush1.xpose.msra.mxu0 0.0
        %442 = vmatprep.subr.mxu0 0.0
        %443 = vmatpush1.xpose.msra.mxu0 0.0
        %444 = vmatprep.subr.mxu0 0.0
        %445 = vmatpush1.xpose.msra.mxu0 0.0
        %446 = vmatprep.subr.mxu0 0.0
        %447 = vmatpush1.xpose.msra.mxu0 0.0
        %448 = vmatprep.subr.mxu0 0.0
        %449 = vmatpush1.xpose.msra.mxu0 0.0
        %450 = vmatprep.subr.mxu0 0.0
        %451 = vmatpush1.xpose.msra.mxu0 0.0
        %452 = vmatprep.subr.mxu0 0.0
        %453 = vmatpush1.xpose.msra.mxu0 0.0
        %454 = vmatprep.subr.mxu0 0.0
        %455 = vmatpush1.xpose.msra.mxu0 0.0
        %456 = vmatprep.subr.mxu0 0.0
        %457 = vmatpush1.xpose.msra.mxu0 0.0
        %458 = vmatprep.mubr.f32.mxu0 0.0
        %459 = vmatmul.mubr.f32.gmra.mrb[0].mxu0 %v390
        %v460 = vpop.f32.mrb[0].mxu0
        %v461 = vadd.f32 %v385, %v460
        %v462 = vpop.f32.mrb[0].mxu0
        %463 = vdwg.mxu0
        %v464 = vsel %vm389, %v461, -inf
        %465 = vmax.xlane.f32.xlu0 %v464
        %v466 = vpop.xlane.xlu0 %465
        %v467 = vsub.f32 %v461, %v466
        %v468 = vmul.f32 %v467, 1.442695
        %v469 = vpow.pop %v468
        %v470 = vsel %vm389, %v469, 0.0
        %471 = vadd.xlane.f32.xlu0 %v470
        %v472 = vpop.xlane.xlu0 %471
        %v473 = vrcp.pop %v472
        %474 = vrot.lane.b32.xlu0 %v384, 64
        %v475 = vpop.permute.xlu0 %474
        %v478 = vsel %vm389, %v469, 0
        %480 = vmatprep.subr.mxu0 0.0
        %481 = vmatpush1.msra.mxu0 %v475
        %482 = vmatprep.subr.mxu0 0.0
        %483 = vmatpush1.msra.mxu0 0.0
        %484 = vmatprep.subr.mxu0 0.0
        %485 = vmatpush1.msra.mxu0 0.0
        %486 = vmatprep.subr.mxu0 0.0
        %487 = vmatpush1.msra.mxu0 0.0
        %488 = vmatprep.subr.mxu0 0.0
        %489 = vmatpush1.msra.mxu0 0.0
        %490 = vmatprep.subr.mxu0 0.0
        %491 = vmatpush1.msra.mxu0 0.0
        %492 = vmatprep.subr.mxu0 0.0
        %493 = vmatpush1.msra.mxu0 0.0
        %494 = vmatprep.subr.mxu0 0.0
        %495 = vmatpush1.msra.mxu0 0.0
        %496 = vmatprep.subr.mxu0 0.0
        %497 = vmatpush1.msra.mxu0 0.0
        %498 = vmatprep.subr.mxu0 0.0
        %499 = vmatpush1.msra.mxu0 0.0
        %500 = vmatprep.subr.mxu0 0.0
        %501 = vmatpush1.msra.mxu0 0.0
        %502 = vmatprep.subr.mxu0 0.0
        %503 = vmatpush1.msra.mxu0 0.0
        %504 = vmatprep.subr.mxu0 0.0
        %505 = vmatpush1.msra.mxu0 0.0
        %506 = vmatprep.subr.mxu0 0.0
        %507 = vmatpush1.msra.mxu0 0.0
        %508 = vmatprep.subr.mxu0 0.0
        %509 = vmatpush1.msra.mxu0 0.0
        %510 = vmatprep.subr.mxu0 0.0
        %511 = vmatpush1.msra.mxu0 0.0
        %512 = vmatprep.subr.mxu0 0.0
        %513 = vmatpush1.msra.mxu0 0.0
        %514 = vmatprep.subr.mxu0 0.0
        %515 = vmatpush1.msra.mxu0 0.0
        %516 = vmatprep.subr.mxu0 0.0
        %517 = vmatpush1.msra.mxu0 0.0
        %518 = vmatprep.subr.mxu0 0.0
        %519 = vmatpush1.msra.mxu0 0.0
        %520 = vmatprep.subr.mxu0 0.0
        %521 = vmatpush1.msra.mxu0 0.0
        %522 = vmatprep.subr.mxu0 0.0
        %523 = vmatpush1.msra.mxu0 0.0
        %524 = vmatprep.subr.mxu0 0.0
        %525 = vmatpush1.msra.mxu0 0.0
        %526 = vmatprep.subr.mxu0 0.0
        %527 = vmatpush1.msra.mxu0 0.0
        %528 = vmatprep.subr.mxu0 0.0
        %529 = vmatpush1.msra.mxu0 0.0
        %530 = vmatprep.subr.mxu0 0.0
        %531 = vmatpush1.msra.mxu0 0.0
        %532 = vmatprep.subr.mxu0 0.0
        %533 = vmatpush1.msra.mxu0 0.0
        %534 = vmatprep.subr.mxu0 0.0
        %535 = vmatpush1.msra.mxu0 0.0
        %536 = vmatprep.subr.mxu0 0.0
        %537 = vmatpush1.msra.mxu0 0.0
        %538 = vmatprep.subr.mxu0 0.0
        %539 = vmatpush1.msra.mxu0 0.0
        %540 = vmatprep.subr.mxu0 0.0
        %541 = vmatpush1.msra.mxu0 0.0
        %542 = vmatprep.subr.mxu0 0.0
        %543 = vmatpush1.msra.mxu0 0.0
        %544 = vmatprep.mubr.f32.mxu0 0.0
        %545 = vmatmul.mubr.f32.gmra.mrb[0].mxu0 %v478
        %v546 = vpop.f32.mrb[0].mxu0
        %v547 = vadd.f32 0.0, %v546
        %v548 = vpop.f32.mrb[0].mxu0
        %549 = vdwg.mxu0
        %v550 = vmul.f32 %v547, %v473
        %551 = vst.msk [vmem:[#allocation3] sm:$0xff] %vm389, %v550
        %v552 = vld [vmem:[#allocation2] sm:$0xff]
        %v553 = vld [vmem:[%s5] sm:$0xff]
        %555 = vrot.lane.b32.xlu0 %v552, 120
        %v556 = vpop.permute.xlu0 %555
        %557 = vrot.lane.b32.xlu0 %v552, 88
        %v558 = vpop.permute.xlu0 %557
        %v559 = vsel %vm389, %v556, 0
        %v561 = vsel %vm389, %v558, 0
        %563 = vmatprep.subr.mxu0 0.0
        %564 = vmatpush1.xpose.msra.mxu0 %v561
        %565 = vmatprep.subr.mxu0 0.0
        %566 = vmatpush1.xpose.msra.mxu0 0.0
        %567 = vmatprep.subr.mxu0 0.0
        %568 = vmatpush1.xpose.msra.mxu0 0.0
        %569 = vmatprep.subr.mxu0 0.0
        %570 = vmatpush1.xpose.msra.mxu0 0.0
        %571 = vmatprep.subr.mxu0 0.0
        %572 = vmatpush1.xpose.msra.mxu0 0.0
        %573 = vmatprep.subr.mxu0 0.0
        %574 = vmatpush1.xpose.msra.mxu0 0.0
        %575 = vmatprep.subr.mxu0 0.0
        %576 = vmatpush1.xpose.msra.mxu0 0.0
        %577 = vmatprep.subr.mxu0 0.0
        %578 = vmatpush1.xpose.msra.mxu0 0.0
        %579 = vmatprep.subr.mxu0 0.0
        %580 = vmatpush1.xpose.msra.mxu0 0.0
        %581 = vmatprep.subr.mxu0 0.0
        %582 = vmatpush1.xpose.msra.mxu0 0.0
        %583 = vmatprep.subr.mxu0 0.0
        %584 = vmatpush1.xpose.msra.mxu0 0.0
        %585 = vmatprep.subr.mxu0 0.0
        %586 = vmatpush1.xpose.msra.mxu0 0.0
        %587 = vmatprep.subr.mxu0 0.0
        %588 = vmatpush1.xpose.msra.mxu0 0.0
        %589 = vmatprep.subr.mxu0 0.0
        %590 = vmatpush1.xpose.msra.mxu0 0.0
        %591 = vmatprep.subr.mxu0 0.0
        %592 = vmatpush1.xpose.msra.mxu0 0.0
        %593 = vmatprep.subr.mxu0 0.0
        %594 = vmatpush1.xpose.msra.mxu0 0.0
        %595 = vmatprep.subr.mxu0 0.0
        %596 = vmatpush1.xpose.msra.mxu0 0.0
        %597 = vmatprep.subr.mxu0 0.0
        %598 = vmatpush1.xpose.msra.mxu0 0.0
        %599 = vmatprep.subr.mxu0 0.0
        %600 = vmatpush1.xpose.msra.mxu0 0.0
        %601 = vmatprep.subr.mxu0 0.0
        %602 = vmatpush1.xpose.msra.mxu0 0.0
        %603 = vmatprep.subr.mxu0 0.0
        %604 = vmatpush1.xpose.msra.mxu0 0.0
        %605 = vmatprep.subr.mxu0 0.0
        %606 = vmatpush1.xpose.msra.mxu0 0.0
        %607 = vmatprep.subr.mxu0 0.0
        %608 = vmatpush1.xpose.msra.mxu0 0.0
        %609 = vmatprep.subr.mxu0 0.0
        %610 = vmatpush1.xpose.msra.mxu0 0.0
        %611 = vmatprep.subr.mxu0 0.0
        %612 = vmatpush1.xpose.msra.mxu0 0.0
        %613 = vmatprep.subr.mxu0 0.0
        %614 = vmatpush1.xpose.msra.mxu0 0.0
        %615 = vmatprep.subr.mxu0 0.0
        %616 = vmatpush1.xpose.msra.mxu0 0.0
        %617 = vmatprep.subr.mxu0 0.0
        %618 = vmatpush1.xpose.msra.mxu0 0.0
        %619 = vmatprep.subr.mxu0 0.0
        %620 = vmatpush1.xpose.msra.mxu0 0.0
        %621 = vmatprep.subr.mxu0 0.0
        %622 = vmatpush1.xpose.msra.mxu0 0.0
        %623 = vmatprep.subr.mxu0 0.0
        %624 = vmatpush1.xpose.msra.mxu0 0.0
        %625 = vmatprep.subr.mxu0 0.0
        %626 = vmatpush1.xpose.msra.mxu0 0.0
        %627 = vmatprep.mubr.f32.mxu0 0.0
        %628 = vmatmul.mubr.f32.gmra.mrb[0].mxu0 %v559
        %v629 = vpop.f32.mrb[0].mxu0
        %v630 = vadd.f32 %v553, %v629
        %v631 = vpop.f32.mrb[0].mxu0
        %632 = vdwg.mxu0
        %v633 = vsel %vm389, %v630, -inf
        %634 = vmax.xlane.f32.xlu0 %v633
        %v635 = vpop.xlane.xlu0 %634
        %v636 = vsub.f32 %v630, %v635
        %v637 = vmul.f32 %v636, 1.442695
        %v638 = vpow.pop %v637
        %v639 = vsel %vm389, %v638, 0.0
        %640 = vadd.xlane.f32.xlu0 %v639
        %v641 = vpop.xlane.xlu0 %640
        %v642 = vrcp.pop %v641
        %643 = vrot.lane.b32.xlu0 %v552, 56
        %v644 = vpop.permute.xlu0 %643
        %v647 = vsel %vm389, %v638, 0
        %649 = vmatprep.subr.mxu0 0.0
        %650 = vmatpush1.msra.mxu0 %v644
        %651 = vmatprep.subr.mxu0 0.0
        %652 = vmatpush1.msra.mxu0 0.0
        %653 = vmatprep.subr.mxu0 0.0
        %654 = vmatpush1.msra.mxu0 0.0
        %655 = vmatprep.subr.mxu0 0.0
        %656 = vmatpush1.msra.mxu0 0.0
        %657 = vmatprep.subr.mxu0 0.0
        %658 = vmatpush1.msra.mxu0 0.0
        %659 = vmatprep.subr.mxu0 0.0
        %660 = vmatpush1.msra.mxu0 0.0
        %661 = vmatprep.subr.mxu0 0.0
        %662 = vmatpush1.msra.mxu0 0.0
        %663 = vmatprep.subr.mxu0 0.0
        %664 = vmatpush1.msra.mxu0 0.0
        %665 = vmatprep.subr.mxu0 0.0
        %666 = vmatpush1.msra.mxu0 0.0
        %667 = vmatprep.subr.mxu0 0.0
        %668 = vmatpush1.msra.mxu0 0.0
        %669 = vmatprep.subr.mxu0 0.0
        %670 = vmatpush1.msra.mxu0 0.0
        %671 = vmatprep.subr.mxu0 0.0
        %672 = vmatpush1.msra.mxu0 0.0
        %673 = vmatprep.subr.mxu0 0.0
        %674 = vmatpush1.msra.mxu0 0.0
        %675 = vmatprep.subr.mxu0 0.0
        %676 = vmatpush1.msra.mxu0 0.0
        %677 = vmatprep.subr.mxu0 0.0
        %678 = vmatpush1.msra.mxu0 0.0
        %679 = vmatprep.subr.mxu0 0.0
        %680 = vmatpush1.msra.mxu0 0.0
        %681 = vmatprep.subr.mxu0 0.0
        %682 = vmatpush1.msra.mxu0 0.0
        %683 = vmatprep.subr.mxu0 0.0
        %684 = vmatpush1.msra.mxu0 0.0
        %685 = vmatprep.subr.mxu0 0.0
        %686 = vmatpush1.msra.mxu0 0.0
        %687 = vmatprep.subr.mxu0 0.0
        %688 = vmatpush1.msra.mxu0 0.0
        %689 = vmatprep.subr.mxu0 0.0
        %690 = vmatpush1.msra.mxu0 0.0
        %691 = vmatprep.subr.mxu0 0.0
        %692 = vmatpush1.msra.mxu0 0.0
        %693 = vmatprep.subr.mxu0 0.0
        %694 = vmatpush1.msra.mxu0 0.0
        %695 = vmatprep.subr.mxu0 0.0
        %696 = vmatpush1.msra.mxu0 0.0
        %697 = vmatprep.subr.mxu0 0.0
        %698 = vmatpush1.msra.mxu0 0.0
        %699 = vmatprep.subr.mxu0 0.0
        %700 = vmatpush1.msra.mxu0 0.0
        %701 = vmatprep.subr.mxu0 0.0
        %702 = vmatpush1.msra.mxu0 0.0
        %703 = vmatprep.subr.mxu0 0.0
        %704 = vmatpush1.msra.mxu0 0.0
        %705 = vmatprep.subr.mxu0 0.0
        %706 = vmatpush1.msra.mxu0 0.0
        %707 = vmatprep.subr.mxu0 0.0
        %708 = vmatpush1.msra.mxu0 0.0
        %709 = vmatprep.subr.mxu0 0.0
        %710 = vmatpush1.msra.mxu0 0.0
        %711 = vmatprep.subr.mxu0 0.0
        %712 = vmatpush1.msra.mxu0 0.0
        %713 = vmatprep.mubr.f32.mxu0 0.0
        %714 = vmatmul.mubr.f32.gmra.mrb[0].mxu0 %v647
        %v715 = vpop.f32.mrb[0].mxu0
        %v716 = vadd.f32 0.0, %v715
        %v717 = vpop.f32.mrb[0].mxu0
        %718 = vdwg.mxu0
        %v719 = vmul.f32 %v716, %v642
        %721 = vrot.lane.b32.xlu0 %v719, 8
        %v722 = vpop.permute.xlu0 %721
        %vm724 = vcmask 130112
        %725 = vst.msk [vmem:[#allocation3] sm:$0xff] %vm724, %v722
        %v726 = vld [vmem:[#allocation2] sm:$0xff]
        %v727 = vld [vmem:[%s5] sm:$0xff]
        %729 = vrot.lane.b32.xlu0 %v726, 112
        %v730 = vpop.permute.xlu0 %729
        %731 = vrot.lane.b32.xlu0 %v726, 80
        %v732 = vpop.permute.xlu0 %731
        %v733 = vsel %vm389, %v730, 0
        %v735 = vsel %vm389, %v732, 0
        %737 = vmatprep.subr.mxu0 0.0
        %738 = vmatpush1.xpose.msra.mxu0 %v735
        %739 = vmatprep.subr.mxu0 0.0
        %740 = vmatpush1.xpose.msra.mxu0 0.0
        %741 = vmatprep.subr.mxu0 0.0
        %742 = vmatpush1.xpose.msra.mxu0 0.0
        %743 = vmatprep.subr.mxu0 0.0
        %744 = vmatpush1.xpose.msra.mxu0 0.0
        %745 = vmatprep.subr.mxu0 0.0
        %746 = vmatpush1.xpose.msra.mxu0 0.0
        %747 = vmatprep.subr.mxu0 0.0
        %748 = vmatpush1.xpose.msra.mxu0 0.0
        %749 = vmatprep.subr.mxu0 0.0
        %750 = vmatpush1.xpose.msra.mxu0 0.0
        %751 = vmatprep.subr.mxu0 0.0
        %752 = vmatpush1.xpose.msra.mxu0 0.0
        %753 = vmatprep.subr.mxu0 0.0
        %754 = vmatpush1.xpose.msra.mxu0 0.0
        %755 = vmatprep.subr.mxu0 0.0
        %756 = vmatpush1.xpose.msra.mxu0 0.0
        %757 = vmatprep.subr.mxu0 0.0
        %758 = vmatpush1.xpose.msra.mxu0 0.0
        %759 = vmatprep.subr.mxu0 0.0
        %760 = vmatpush1.xpose.msra.mxu0 0.0
        %761 = vmatprep.subr.mxu0 0.0
        %762 = vmatpush1.xpose.msra.mxu0 0.0
        %763 = vmatprep.subr.mxu0 0.0
        %764 = vmatpush1.xpose.msra.mxu0 0.0
        %765 = vmatprep.subr.mxu0 0.0
        %766 = vmatpush1.xpose.msra.mxu0 0.0
        %767 = vmatprep.subr.mxu0 0.0
        %768 = vmatpush1.xpose.msra.mxu0 0.0
        %769 = vmatprep.subr.mxu0 0.0
        %770 = vmatpush1.xpose.msra.mxu0 0.0
        %771 = vmatprep.subr.mxu0 0.0
        %772 = vmatpush1.xpose.msra.mxu0 0.0
        %773 = vmatprep.subr.mxu0 0.0
        %774 = vmatpush1.xpose.msra.mxu0 0.0
        %775 = vmatprep.subr.mxu0 0.0
        %776 = vmatpush1.xpose.msra.mxu0 0.0
        %777 = vmatprep.subr.mxu0 0.0
        %778 = vmatpush1.xpose.msra.mxu0 0.0
        %779 = vmatprep.subr.mxu0 0.0
        %780 = vmatpush1.xpose.msra.mxu0 0.0
        %781 = vmatprep.subr.mxu0 0.0
        %782 = vmatpush1.xpose.msra.mxu0 0.0
        %783 = vmatprep.subr.mxu0 0.0
        %784 = vmatpush1.xpose.msra.mxu0 0.0
        %785 = vmatprep.subr.mxu0 0.0
        %786 = vmatpush1.xpose.msra.mxu0 0.0
        %787 = vmatprep.subr.mxu0 0.0
        %788 = vmatpush1.xpose.msra.mxu0 0.0
        %789 = vmatprep.subr.mxu0 0.0
        %790 = vmatpush1.xpose.msra.mxu0 0.0
        %791 = vmatprep.subr.mxu0 0.0
        %792 = vmatpush1.xpose.msra.mxu0 0.0
        %793 = vmatprep.subr.mxu0 0.0
        %794 = vmatpush1.xpose.msra.mxu0 0.0
        %795 = vmatprep.subr.mxu0 0.0
        %796 = vmatpush1.xpose.msra.mxu0 0.0
        %797 = vmatprep.subr.mxu0 0.0
        %798 = vmatpush1.xpose.msra.mxu0 0.0
        %799 = vmatprep.subr.mxu0 0.0
        %800 = vmatpush1.xpose.msra.mxu0 0.0
        %801 = vmatprep.mubr.f32.mxu0 0.0
        %802 = vmatmul.mubr.f32.gmra.mrb[0].mxu0 %v733
        %v803 = vpop.f32.mrb[0].mxu0
        %v804 = vadd.f32 %v727, %v803
        %v805 = vpop.f32.mrb[0].mxu0
        %806 = vdwg.mxu0
        %v807 = vsel %vm389, %v804, -inf
        %808 = vmax.xlane.f32.xlu0 %v807
        %v809 = vpop.xlane.xlu0 %808
        %v810 = vsub.f32 %v804, %v809
        %v811 = vmul.f32 %v810, 1.442695
        %v812 = vpow.pop %v811
        %v813 = vsel %vm389, %v812, 0.0
        %814 = vadd.xlane.f32.xlu0 %v813
        %v815 = vpop.xlane.xlu0 %814
        %v816 = vrcp.pop %v815
        %817 = vrot.lane.b32.xlu0 %v726, 48
        %v818 = vpop.permute.xlu0 %817
        %v821 = vsel %vm389, %v812, 0
        %823 = vmatprep.subr.mxu0 0.0
        %824 = vmatpush1.msra.mxu0 %v818
        %825 = vmatprep.subr.mxu0 0.0
        %826 = vmatpush1.msra.mxu0 0.0
        %827 = vmatprep.subr.mxu0 0.0
        %828 = vmatpush1.msra.mxu0 0.0
        %829 = vmatprep.subr.mxu0 0.0
        %830 = vmatpush1.msra.mxu0 0.0
        %831 = vmatprep.subr.mxu0 0.0
        %832 = vmatpush1.msra.mxu0 0.0
        %833 = vmatprep.subr.mxu0 0.0
        %834 = vmatpush1.msra.mxu0 0.0
        %835 = vmatprep.subr.mxu0 0.0
        %836 = vmatpush1.msra.mxu0 0.0
        %837 = vmatprep.subr.mxu0 0.0
        %838 = vmatpush1.msra.mxu0 0.0
        %839 = vmatprep.subr.mxu0 0.0
        %840 = vmatpush1.msra.mxu0 0.0
        %841 = vmatprep.subr.mxu0 0.0
        %842 = vmatpush1.msra.mxu0 0.0
        %843 = vmatprep.subr.mxu0 0.0
        %844 = vmatpush1.msra.mxu0 0.0
        %845 = vmatprep.subr.mxu0 0.0
        %846 = vmatpush1.msra.mxu0 0.0
        %847 = vmatprep.subr.mxu0 0.0
        %848 = vmatpush1.msra.mxu0 0.0
        %849 = vmatprep.subr.mxu0 0.0
        %850 = vmatpush1.msra.mxu0 0.0
        %851 = vmatprep.subr.mxu0 0.0
        %852 = vmatpush1.msra.mxu0 0.0
        %853 = vmatprep.subr.mxu0 0.0
        %854 = vmatpush1.msra.mxu0 0.0
        %855 = vmatprep.subr.mxu0 0.0
        %856 = vmatpush1.msra.mxu0 0.0
        %857 = vmatprep.subr.mxu0 0.0
        %858 = vmatpush1.msra.mxu0 0.0
        %859 = vmatprep.subr.mxu0 0.0
        %860 = vmatpush1.msra.mxu0 0.0
        %861 = vmatprep.subr.mxu0 0.0
        %862 = vmatpush1.msra.mxu0 0.0
        %863 = vmatprep.subr.mxu0 0.0
        %864 = vmatpush1.msra.mxu0 0.0
        %865 = vmatprep.subr.mxu0 0.0
        %866 = vmatpush1.msra.mxu0 0.0
        %867 = vmatprep.subr.mxu0 0.0
        %868 = vmatpush1.msra.mxu0 0.0
        %869 = vmatprep.subr.mxu0 0.0
        %870 = vmatpush1.msra.mxu0 0.0
        %871 = vmatprep.subr.mxu0 0.0
        %872 = vmatpush1.msra.mxu0 0.0
        %873 = vmatprep.subr.mxu0 0.0
        %874 = vmatpush1.msra.mxu0 0.0
        %875 = vmatprep.subr.mxu0 0.0
        %876 = vmatpush1.msra.mxu0 0.0
        %877 = vmatprep.subr.mxu0 0.0
        %878 = vmatpush1.msra.mxu0 0.0
        %879 = vmatprep.subr.mxu0 0.0
        %880 = vmatpush1.msra.mxu0 0.0
        %881 = vmatprep.subr.mxu0 0.0
        %882 = vmatpush1.msra.mxu0 0.0
        %883 = vmatprep.subr.mxu0 0.0
        %884 = vmatpush1.msra.mxu0 0.0
        %885 = vmatprep.subr.mxu0 0.0
        %886 = vmatpush1.msra.mxu0 0.0
        %887 = vmatprep.mubr.f32.mxu0 0.0
        %888 = vmatmul.mubr.f32.gmra.mrb[0].mxu0 %v821
        %v889 = vpop.f32.mrb[0].mxu0
        %v890 = vadd.f32 0.0, %v889
        %v891 = vpop.f32.mrb[0].mxu0
        %892 = vdwg.mxu0
        %v893 = vmul.f32 %v890, %v816
        %895 = vrot.lane.b32.xlu0 %v893, 16
        %v896 = vpop.permute.xlu0 %895
        %vm898 = vcmask 195712
        %899 = vst.msk [vmem:[#allocation3] sm:$0xff] %vm898, %v896
        %v900 = vld [vmem:[#allocation2] sm:$0xff]
        %v901 = vld [vmem:[%s5] sm:$0xff]
        %903 = vrot.lane.b32.xlu0 %v900, 104
        %v904 = vpop.permute.xlu0 %903
        %905 = vrot.lane.b32.xlu0 %v900, 72
        %v906 = vpop.permute.xlu0 %905
        %v907 = vsel %vm389, %v904, 0
        %v909 = vsel %vm389, %v906, 0
        %911 = vmatprep.subr.mxu0 0.0
        %912 = vmatpush1.xpose.msra.mxu0 %v909
        %913 = vmatprep.subr.mxu0 0.0
        %914 = vmatpush1.xpose.msra.mxu0 0.0
        %915 = vmatprep.subr.mxu0 0.0
        %916 = vmatpush1.xpose.msra.mxu0 0.0
        %917 = vmatprep.subr.mxu0 0.0
        %918 = vmatpush1.xpose.msra.mxu0 0.0
        %919 = vmatprep.subr.mxu0 0.0
        %920 = vmatpush1.xpose.msra.mxu0 0.0
        %921 = vmatprep.subr.mxu0 0.0
        %922 = vmatpush1.xpose.msra.mxu0 0.0
        %923 = vmatprep.subr.mxu0 0.0
        %924 = vmatpush1.xpose.msra.mxu0 0.0
        %925 = vmatprep.subr.mxu0 0.0
        %926 = vmatpush1.xpose.msra.mxu0 0.0
        %927 = vmatprep.subr.mxu0 0.0
        %928 = vmatpush1.xpose.msra.mxu0 0.0
        %929 = vmatprep.subr.mxu0 0.0
        %930 = vmatpush1.xpose.msra.mxu0 0.0
        %931 = vmatprep.subr.mxu0 0.0
        %932 = vmatpush1.xpose.msra.mxu0 0.0
        %933 = vmatprep.subr.mxu0 0.0
        %934 = vmatpush1.xpose.msra.mxu0 0.0
        %935 = vmatprep.subr.mxu0 0.0
        %936 = vmatpush1.xpose.msra.mxu0 0.0
        %937 = vmatprep.subr.mxu0 0.0
        %938 = vmatpush1.xpose.msra.mxu0 0.0
        %939 = vmatprep.subr.mxu0 0.0
        %940 = vmatpush1.xpose.msra.mxu0 0.0
        %941 = vmatprep.subr.mxu0 0.0
        %942 = vmatpush1.xpose.msra.mxu0 0.0
        %943 = vmatprep.subr.mxu0 0.0
        %944 = vmatpush1.xpose.msra.mxu0 0.0
        %945 = vmatprep.subr.mxu0 0.0
        %946 = vmatpush1.xpose.msra.mxu0 0.0
        %947 = vmatprep.subr.mxu0 0.0
        %948 = vmatpush1.xpose.msra.mxu0 0.0
        %949 = vmatprep.subr.mxu0 0.0
        %950 = vmatpush1.xpose.msra.mxu0 0.0
        %951 = vmatprep.subr.mxu0 0.0
        %952 = vmatpush1.xpose.msra.mxu0 0.0
        %953 = vmatprep.subr.mxu0 0.0
        %954 = vmatpush1.xpose.msra.mxu0 0.0
        %955 = vmatprep.subr.mxu0 0.0
        %956 = vmatpush1.xpose.msra.mxu0 0.0
        %957 = vmatprep.subr.mxu0 0.0
        %958 = vmatpush1.xpose.msra.mxu0 0.0
        %959 = vmatprep.subr.mxu0 0.0
        %960 = vmatpush1.xpose.msra.mxu0 0.0
        %961 = vmatprep.subr.mxu0 0.0
        %962 = vmatpush1.xpose.msra.mxu0 0.0
        %963 = vmatprep.subr.mxu0 0.0
        %964 = vmatpush1.xpose.msra.mxu0 0.0
        %965 = vmatprep.subr.mxu0 0.0
        %966 = vmatpush1.xpose.msra.mxu0 0.0
        %967 = vmatprep.subr.mxu0 0.0
        %968 = vmatpush1.xpose.msra.mxu0 0.0
        %969 = vmatprep.subr.mxu0 0.0
        %970 = vmatpush1.xpose.msra.mxu0 0.0
        %971 = vmatprep.subr.mxu0 0.0
        %972 = vmatpush1.xpose.msra.mxu0 0.0
        %973 = vmatprep.subr.mxu0 0.0
        %974 = vmatpush1.xpose.msra.mxu0 0.0
        %975 = vmatprep.mubr.f32.mxu0 0.0
        %976 = vmatmul.mubr.f32.gmra.mrb[0].mxu0 %v907
        %v977 = vpop.f32.mrb[0].mxu0
        %v978 = vadd.f32 %v901, %v977
        %v979 = vpop.f32.mrb[0].mxu0
        %980 = vdwg.mxu0
        %v981 = vsel %vm389, %v978, -inf
        %982 = vmax.xlane.f32.xlu0 %v981
        %v983 = vpop.xlane.xlu0 %982
        %v984 = vsub.f32 %v978, %v983
        %v985 = vmul.f32 %v984, 1.442695
        %v986 = vpow.pop %v985
        %v987 = vsel %vm389, %v986, 0.0
        %988 = vadd.xlane.f32.xlu0 %v987
        %v989 = vpop.xlane.xlu0 %988
        %v990 = vrcp.pop %v989
        %991 = vrot.lane.b32.xlu0 %v900, 40
        %v992 = vpop.permute.xlu0 %991
        %v995 = vsel %vm389, %v986, 0
        %997 = vmatprep.subr.mxu0 0.0
        %998 = vmatpush1.msra.mxu0 %v992
        %999 = vmatprep.subr.mxu0 0.0
        %1000 = vmatpush1.msra.mxu0 0.0
        %1001 = vmatprep.subr.mxu0 0.0
        %1002 = vmatpush1.msra.mxu0 0.0
        %1003 = vmatprep.subr.mxu0 0.0
        %1004 = vmatpush1.msra.mxu0 0.0
        %1005 = vmatprep.subr.mxu0 0.0
        %1006 = vmatpush1.msra.mxu0 0.0
        %1007 = vmatprep.subr.mxu0 0.0
        %1008 = vmatpush1.msra.mxu0 0.0
        %1009 = vmatprep.subr.mxu0 0.0
        %1010 = vmatpush1.msra.mxu0 0.0
        %1011 = vmatprep.subr.mxu0 0.0
        %1012 = vmatpush1.msra.mxu0 0.0
        %1013 = vmatprep.subr.mxu0 0.0
        %1014 = vmatpush1.msra.mxu0 0.0
        %1015 = vmatprep.subr.mxu0 0.0
        %1016 = vmatpush1.msra.mxu0 0.0
        %1017 = vmatprep.subr.mxu0 0.0
        %1018 = vmatpush1.msra.mxu0 0.0
        %1019 = vmatprep.subr.mxu0 0.0
        %1020 = vmatpush1.msra.mxu0 0.0
        %1021 = vmatprep.subr.mxu0 0.0
        %1022 = vmatpush1.msra.mxu0 0.0
        %1023 = vmatprep.subr.mxu0 0.0
        %1024 = vmatpush1.msra.mxu0 0.0
        %1025 = vmatprep.subr.mxu0 0.0
        %1026 = vmatpush1.msra.mxu0 0.0
        %1027 = vmatprep.subr.mxu0 0.0
        %1028 = vmatpush1.msra.mxu0 0.0
        %1029 = vmatprep.subr.mxu0 0.0
        %1030 = vmatpush1.msra.mxu0 0.0
        %1031 = vmatprep.subr.mxu0 0.0
        %1032 = vmatpush1.msra.mxu0 0.0
        %1033 = vmatprep.subr.mxu0 0.0
        %1034 = vmatpush1.msra.mxu0 0.0
        %1035 = vmatprep.subr.mxu0 0.0
        %1036 = vmatpush1.msra.mxu0 0.0
        %1037 = vmatprep.subr.mxu0 0.0
        %1038 = vmatpush1.msra.mxu0 0.0
        %1039 = vmatprep.subr.mxu0 0.0
        %1040 = vmatpush1.msra.mxu0 0.0
        %1041 = vmatprep.subr.mxu0 0.0
        %1042 = vmatpush1.msra.mxu0 0.0
        %1043 = vmatprep.subr.mxu0 0.0
        %1044 = vmatpush1.msra.mxu0 0.0
        %1045 = vmatprep.subr.mxu0 0.0
        %1046 = vmatpush1.msra.mxu0 0.0
        %1047 = vmatprep.subr.mxu0 0.0
        %1048 = vmatpush1.msra.mxu0 0.0
        %1049 = vmatprep.subr.mxu0 0.0
        %1050 = vmatpush1.msra.mxu0 0.0
        %1051 = vmatprep.subr.mxu0 0.0
        %1052 = vmatpush1.msra.mxu0 0.0
        %1053 = vmatprep.subr.mxu0 0.0
        %1054 = vmatpush1.msra.mxu0 0.0
        %1055 = vmatprep.subr.mxu0 0.0
        %1056 = vmatpush1.msra.mxu0 0.0
        %1057 = vmatprep.subr.mxu0 0.0
        %1058 = vmatpush1.msra.mxu0 0.0
        %1059 = vmatprep.subr.mxu0 0.0
        %1060 = vmatpush1.msra.mxu0 0.0
        %1061 = vmatprep.mubr.f32.mxu0 0.0
        %1062 = vmatmul.mubr.f32.gmra.mrb[0].mxu0 %v995
        %v1063 = vpop.f32.mrb[0].mxu0
        %v1064 = vadd.f32 0.0, %v1063
        %v1065 = vpop.f32.mrb[0].mxu0
        %1066 = vdwg.mxu0
        %v1067 = vmul.f32 %v1064, %v990
        %1069 = vrot.lane.b32.xlu0 %v1067, 24
        %v1070 = vpop.permute.xlu0 %1069
        %vm1072 = vcmask 261312
        %1073 = vst.msk [vmem:[#allocation3] sm:$0xff] %vm1072, %v1070
        %v1074 = vld [vmem:[#allocation3] sm:$0xff]
        %v1075 = vld [vmem:[#allocation9] sm:$0xff]
        %v1076 = vld [vmem:[#allocation9 + $0x8] sm:$0xff]
        %v1077 = vld [vmem:[#allocation9 + $0x10] sm:$0xff]
        %v1078 = vld [vmem:[#allocation9 + $0x18] sm:$0xff]
        %v1079 = vld [vmem:[%s4] sm:$0x1]
        %v1081 = vlaneseq
        %v1082 = vshrl.u32 %v1081, 7
        %v1083 = vsub.s32 0, %v1082
        %v1084 = vrot.slane %v1079, %v1083
        %v1087 = vsel %vm308, %v1074, 0
        %1089 = vmatprep.subr.mxu0 0.0
        %1090 = vmatpush1.msra.mxu0 %v1075
        %1091 = vmatprep.subr.mxu0 0.0
        %1092 = vmatpush1.msra.mxu0 %v1076
        %1093 = vmatprep.subr.mxu0 0.0
        %1094 = vmatpush1.msra.mxu0 %v1077
        %1095 = vmatprep.subr.mxu0 0.0
        %1096 = vmatpush1.msra.mxu0 %v1078
        %1097 = vmatprep.subr.mxu0 0.0
        %1098 = vmatpush1.msra.mxu0 0.0
        %1099 = vmatprep.subr.mxu0 0.0
        %1100 = vmatpush1.msra.mxu0 0.0
        %1101 = vmatprep.subr.mxu0 0.0
        %1102 = vmatpush1.msra.mxu0 0.0
        %1103 = vmatprep.subr.mxu0 0.0
        %1104 = vmatpush1.msra.mxu0 0.0
        %1105 = vmatprep.subr.mxu0 0.0
        %1106 = vmatpush1.msra.mxu0 0.0
        %1107 = vmatprep.subr.mxu0 0.0
        %1108 = vmatpush1.msra.mxu0 0.0
        %1109 = vmatprep.subr.mxu0 0.0
        %1110 = vmatpush1.msra.mxu0 0.0
        %1111 = vmatprep.subr.mxu0 0.0
        %1112 = vmatpush1.msra.mxu0 0.0
        %1113 = vmatprep.subr.mxu0 0.0
        %1114 = vmatpush1.msra.mxu0 0.0
        %1115 = vmatprep.subr.mxu0 0.0
        %1116 = vmatpush1.msra.mxu0 0.0
        %1117 = vmatprep.subr.mxu0 0.0
        %1118 = vmatpush1.msra.mxu0 0.0
        %1119 = vmatprep.subr.mxu0 0.0
        %1120 = vmatpush1.msra.mxu0 0.0
        %1121 = vmatprep.subr.mxu0 0.0
        %1122 = vmatpush1.msra.mxu0 0.0
        %1123 = vmatprep.subr.mxu0 0.0
        %1124 = vmatpush1.msra.mxu0 0.0
        %1125 = vmatprep.subr.mxu0 0.0
        %1126 = vmatpush1.msra.mxu0 0.0
        %1127 = vmatprep.subr.mxu0 0.0
        %1128 = vmatpush1.msra.mxu0 0.0
        %1129 = vmatprep.subr.mxu0 0.0
        %1130 = vmatpush1.msra.mxu0 0.0
        %1131 = vmatprep.subr.mxu0 0.0
        %1132 = vmatpush1.msra.mxu0 0.0
        %1133 = vmatprep.subr.mxu0 0.0
        %1134 = vmatpush1.msra.mxu0 0.0
        %1135 = vmatprep.subr.mxu0 0.0
        %1136 = vmatpush1.msra.mxu0 0.0
        %1137 = vmatprep.subr.mxu0 0.0
        %1138 = vmatpush1.msra.mxu0 0.0
        %1139 = vmatprep.subr.mxu0 0.0
        %1140 = vmatpush1.msra.mxu0 0.0
        %1141 = vmatprep.subr.mxu0 0.0
        %1142 = vmatpush1.msra.mxu0 0.0
        %1143 = vmatprep.subr.mxu0 0.0
        %1144 = vmatpush1.msra.mxu0 0.0
        %1145 = vmatprep.subr.mxu0 0.0
        %1146 = vmatpush1.msra.mxu0 0.0
        %1147 = vmatprep.subr.mxu0 0.0
        %1148 = vmatpush1.msra.mxu0 0.0
        %1149 = vmatprep.subr.mxu0 0.0
        %1150 = vmatpush1.msra.mxu0 0.0
        %1151 = vmatprep.subr.mxu0 0.0
        %1152 = vmatpush1.msra.mxu0 0.0
        %1153 = vmatprep.mubr.f32.mxu0 0.0
        %1154 = vmatmul.mubr.f32.gmra.mrb[0].mxu0 %v1087
        %v1155 = vpop.f32.mrb[0].mxu0
        %v1156 = vadd.f32 %v1084, %v1155
        %v1157 = vpop.f32.mrb[0].mxu0
        %1158 = vdwg.mxu0
        %1159 = vst.msk [vmem:[%s295] sm:$0xff] %vm308, %v1156
        %s1160 = sand.u32 %s163, 1
        %s1161 = scalar_lea.sflag [#allocation6], %s1160
        %s1162 = sand.u32 %s163, 1
        %s1163 = smul.addr %s1162, 8
        %s1164 = scalar_lea.vmem [#allocation10], %s1163
        // Predicated region
        $region57: #{tpu_custom_call.1} parent=43 // pred_check
          %p1165 = pneg %p173
        $region58: #{tpu_custom_call.1} parent=43 // pred_check_branch
          %1167 = sbr.rel (%p1165) target = $region60
        $region59: #{tpu_custom_call.1} parent=43 // pred_region
          %s1169 = ssub.s32 128, 128
          %1170 = vsyncadd %s1161, %s1169
          %s1171 = smul.addr %s24, 128
          %s1172 = scalar_lea.hbm %s6, %s1171
          %s1174 = sshll.u32 %s1164, 4
          %s1175 = int_to_ptr.vmem [resolvable:$true] %s1174
          %1177 = dma.vmem_to_hbm [thread:$0]  %s1175, 128, %s1172, %s1161
        $region60: #{tpu_custom_call.1} parent=43 // pred_fallthru
          _
      $region44: #{tpu_custom_call.1} parent=5 // pred_fallthru
        _
      %p1178 = scmp.le.s32.totalorder 2, %s19
      // Predicated region
      $region61: #{tpu_custom_call.1} parent=5 // pred_check
        %p1179 = pneg %p1178
      $region62: #{tpu_custom_call.1} parent=5 // pred_check_branch
        %1181 = sbr.rel (%p1179) target = $region64
      $region63: #{tpu_custom_call.1} parent=5 // pred_region
        %s1182 = ssub.s32 %s19, 2
        // Predicated region
        $region65: #{tpu_custom_call.1} parent=63 // pred_check
          %p1183 = pneg %p179
        $region66: #{tpu_custom_call.1} parent=63 // pred_check_branch
          %1185 = sbr.rel (%p1183) target = $region68
        $region67: #{tpu_custom_call.1} parent=63 // pred_region
          %s1186 = sand.u32 %s164, 1
          %s1187 = scalar_lea.sflag [#allocation6], %s1186
          %s1188 = sand.u32 %s164, 1
          %s1189 = smul.addr %s1188, 8
          %s1190 = scalar_lea.vmem [#allocation10], %s1189
          %1191 = dma.done %s1187, 128
        $region68: #{tpu_custom_call.1} parent=63 // pred_fallthru
          _
      $region64: #{tpu_custom_call.1} parent=5 // pred_fallthru
        _
    $region6: #{tpu_custom_call.1} parent=1 // loop_footer
      %s23 = sadd.s32 1, %s19
    $region7: #{tpu_custom_call.1} parent=1 // loop_footer_branch
      %18 = sbr.rel target = $region3
    $region8: #{tpu_custom_call.1} parent=1 // loop_exit
      _
    %1192 = vsyncpa [#allocation5], 1
    %s1193 = scalar_lea.sflag [#allocation5], 1
    %1194 = vsyncpa %s1193, 1
    %1195 = vsyncpa [#allocation8], 1
    %1196 = vsyncpa [#allocation6], 1
    %s1197 = scalar_lea.sflag [#allocation6], 1
    %1198 = vsyncpa %s1197, 1

</llo_original>
